<compile_context>
chip_gen: v7x
topology: tpu7x:2x2x1
jax: 0.10.0
libtpu: 0.0.40
codegen_flags: <defaults>
</compile_context>

<pallas_src>
import functools

import numpy as np
import jax
import jax.numpy as jnp
from jax import lax
from jax.experimental import pallas as pl
from jax.experimental.pallas import tpu as pltpu


# ---------------------------------------------------------------------------
# in-kernel helpers (traced inside the Pallas kernel)
# ---------------------------------------------------------------------------
def _kl_rows(student_logits, teacher_logits, temp):
    """Per-row KL( softmax(t/T) || softmax(s/T) ), shape (rows, 1).

    Single exp pass per operand:
        KL_row = (1/sum_t) * sum_c e_t * (t~ - s~) + log(sum_s) - log(sum_t)
    with x~ = x/T - max(x/T), e_x = exp(x~), sum_x = sum_c e_x.
    The trailing divide / logs act only on (rows, 1) columns.
    """
    inv_t = 1.0 / temp
    s = student_logits * inv_t
    t = teacher_logits * inv_t
    s_shift = s - jnp.max(s, axis=-1, keepdims=True)
    t_shift = t - jnp.max(t, axis=-1, keepdims=True)
    e_s = jnp.exp(s_shift)
    e_t = jnp.exp(t_shift)
    sum_s = jnp.sum(e_s, axis=-1, keepdims=True)
    sum_t = jnp.sum(e_t, axis=-1, keepdims=True)
    cross = jnp.sum(e_t * (t_shift - s_shift), axis=-1, keepdims=True)
    return cross / sum_t + jnp.log(sum_s) - jnp.log(sum_t)


def _row_sums_as_lane(x):
    """Per-row sums of x:(R, C), returned lane-oriented as (1, R).

    Implemented as a tiny (1, C) x (R, C)^T matmul on the MXU, so no in-kernel transpose or
    O(R^2) diagonal-select temp is needed to obtain a row-oriented copy of a per-row reduction.
    Exact for 0/1 inputs (f32 accumulation).
    """
    cols = x.shape[-1]
    ones = jnp.ones((1, cols), jnp.float32)
    return lax.dot_general(ones, x, (((1,), (1,)), ((), ())),
                           preferred_element_type=jnp.float32)


def _normalize_rows(x, eps=1e-8):
    """L2-normalize rows with a single rsqrt; norms clamped at eps (matches F.cosine_similarity
    except for degenerate near-zero-norm rows)."""
    xf = x.astype(jnp.float32)
    inv = lax.rsqrt(jnp.maximum(jnp.sum(xf * xf, axis=-1, keepdims=True), eps * eps))
    return (xf * inv).astype(x.dtype)


def _cosine_matrix(aug, normal):
    """cos[i, j] = cosine(aug[i, :], normal[j, :]); the feature-dim contraction stays on the MXU
    in the operands' native dtype (bf16 features are fed as bf16)."""
    a = _normalize_rows(aug)
    n = _normalize_rows(normal)
    return lax.dot_general(a, n, (((1,), (1,)), ((), ())),
                           preferred_element_type=jnp.float32)


def _selection_mask(greater, ratio):
    """SSKD "distill index" selection as a 0/1 row mask.

    greater: (n, m) f32 0/1 matrix, greater[i, c] = [teacher_score[i, c] > teacher_target_score[i]].
    (Softmax is monotone per row, so the teacher rank of the true target equals this count.)

    Selected rows = all rank-0 rows plus the floor(wrong_num * ratio) wrong rows with the
    smallest ranks (stable order), i.e. the first k rows of a stable ascending argsort of the
    ranks -- computed with counting math only (no sort, no dynamic shapes).
    Returns (mask (n, 1) f32, k scalar f32 >= 1).
    """
    n = greater.shape[0]
    rank_col = jnp.sum(greater, axis=-1, keepdims=True)            # (n, 1)
    rank_row = _row_sums_as_lane(greater)                          # (1, n), exact integer counts
    correct_num = jnp.sum((rank_col == 0.0).astype(jnp.float32))
    wrong_num = n - correct_num
    k = correct_num + jnp.floor(wrong_num * ratio)
    # Guard: the degenerate empty-selection case would be 0/0 (NaN) in PyTorch; return 0 instead.
    k = jnp.maximum(k, 1.0)

    row_i = lax.broadcasted_iota(jnp.int32, (n, n), 0)
    col_i = lax.broadcasted_iota(jnp.int32, (n, n), 1)
    before = (rank_row < rank_col) | ((rank_row == rank_col) & (col_i < row_i))
    pos = jnp.sum(before.astype(jnp.float32), axis=-1, keepdims=True)   # stable sort position
    return (pos < k).astype(jnp.float32), k


# ---------------------------------------------------------------------------
# the fused SSKD loss kernel
# ---------------------------------------------------------------------------
def _sskd_loss_kernel(s_norm_ref, t_norm_ref, s_aug_ref, t_aug_ref,
                      s_ss_norm_ref, s_ss_aug_ref, t_ss_norm_ref, t_ss_aug_ref,
                      targets_ref, aug_targets_ref,
                      ce_ref, kl_ref, ss_ref, tf_ref, *,
                      kl_temp, ss_temp, tf_temp, ss_ratio, tf_ratio):
    n1, num_classes = s_norm_ref.shape
    n3 = s_aug_ref.shape[0]
    f32 = jnp.float32

    s_norm = s_norm_ref[...].astype(f32)
    t_norm = t_norm_ref[...].astype(f32)
    s_aug = s_aug_ref[...].astype(f32)
    t_aug = t_aug_ref[...].astype(f32)

    # ---- cross-entropy on the student's normal-image logits (mean reduction) ----
    targets = targets_ref[...]                                            # (n1, 1) int32
    cls1 = lax.broadcasted_iota(jnp.int32, (n1, num_classes), 1)
    m = jnp.max(s_norm, axis=-1, keepdims=True)
    lse = m + jnp.log(jnp.sum(jnp.exp(s_norm - m), axis=-1, keepdims=True))
    tgt_logit = jnp.sum(jnp.where(cls1 == targets, s_norm, 0.0), axis=-1, keepdims=True)
    ce_loss = jnp.sum(lse - tgt_logit) / n1

    # ---- vanilla KD KL on the normal-image logits (batchmean) ----
    kl_loss = (kl_temp ** 2) * jnp.sum(_kl_rows(s_norm, t_norm, kl_temp)) / n1

    # ---- TF loss: KL on teacher-selected augmented-image logits ----
    aug_targets = aug_targets_ref[...]                                    # (n3, 1) int32
    cls3 = lax.broadcasted_iota(jnp.int32, (n3, num_classes), 1)
    t_tgt_logit = jnp.sum(jnp.where(cls3 == aug_targets, t_aug, 0.0), axis=-1, keepdims=True)
    # rank of the true class in the teacher's temperature-softmaxed prediction; softmax is
    # monotone per row so the rank is counted directly on the logits.
    tf_greater = (t_aug > t_tgt_logit).astype(f32)
    tf_mask, tf_k = _selection_mask(tf_greater, tf_ratio)
    tf_loss = (tf_temp ** 2) * jnp.sum(tf_mask * _kl_rows(s_aug, t_aug, tf_temp)) / tf_k

    # ---- SS loss: KL on teacher-selected rows of the aug-vs-normal cosine-sim matrices ----
    s_cos = _cosine_matrix(s_ss_aug_ref[...], s_ss_norm_ref[...])         # (n3, n1) f32
    t_cos = _cosine_matrix(t_ss_aug_ref[...], t_ss_norm_ref[...])
    # aug row a corresponds to normal column a // 3 (expressed without integer division)
    row_i = lax.broadcasted_iota(jnp.int32, (n3, n1), 0)
    col_i = lax.broadcasted_iota(jnp.int32, (n3, n1), 1)
    ss_eq = (row_i >= 3 * col_i) & (row_i < 3 * col_i + 3)
    t_tgt_cos = jnp.sum(jnp.where(ss_eq, t_cos, 0.0), axis=-1, keepdims=True)
    ss_greater = (t_cos > t_tgt_cos).astype(f32)
    ss_mask, ss_k = _selection_mask(ss_greater, ss_ratio)
    ss_loss = (ss_temp ** 2) * jnp.sum(ss_mask * _kl_rows(s_cos, t_cos, ss_temp)) / ss_k

    # ---- write the four components as four (1, 1) scalar outputs ----
    ce_ref[...] = jnp.broadcast_to(ce_loss, (1, 1))
    kl_ref[...] = jnp.broadcast_to(kl_loss, (1, 1))
    ss_ref[...] = jnp.broadcast_to(ss_loss, (1, 1))
    tf_ref[...] = jnp.broadcast_to(tf_loss, (1, 1))


# ---------------------------------------------------------------------------
# wrapper
# ---------------------------------------------------------------------------
def sskd_component_losses(student_linear, teacher_linear, student_ss, teacher_ss, targets, *,
                          kl_temp, ss_temp, tf_temp, ss_ratio, tf_ratio):
    """Returns (ce_loss, kl_loss, ss_loss, tf_loss) computed by a single fused Pallas kernel."""
    batch_size = student_linear.shape[0]
    if batch_size % 4 != 0:
        raise ValueError("SSKD expects the batch laid out in groups of 4 "
                         "(1 normal + 3 augmented images); got batch_size=%d" % batch_size)
    n1 = batch_size // 4
    n3 = batch_size - n1
    num_classes = student_linear.shape[-1]
    feat_dim = student_ss.shape[-1]

    # TODO(synk): fold this normal/aug split into the kernel (strided pl.ds loads or an MXU
    # gather) to remove the extra HBM round trip; kept wrapper-side for lowering robustness.
    def split(x):  # rows [4j] are 'normal', rows [4j+1..4j+3] are 'aug' (interleaved order)
        x4 = x.reshape(n1, 4, x.shape[-1])
        return x4[:, 0, :], x4[:, 1:, :].reshape(n3, x.shape[-1])

    s_norm, s_aug = split(student_linear)
    t_norm, t_aug = split(teacher_linear)
    s_ss_norm, s_ss_aug = split(student_ss)
    t_ss_norm, t_ss_aug = split(teacher_ss)

    tgt = targets.astype(jnp.int32).reshape(n1, 1)
    aug_tgt = jnp.repeat(targets.astype(jnp.int32), 3).reshape(n3, 1)

    operands = (s_norm, t_norm, s_aug, t_aug,
                s_ss_norm, s_ss_aug, t_ss_norm, t_ss_aug, tgt, aug_tgt)

    # Rough, advisory cost model: helps XLA schedule the surrounding split / weighted-sum ops.
    flops = int(4 * n3 * n1 * feat_dim                      # two cosine matmuls
                + 4 * n3 * (num_classes + n1)               # rank-row matmuls
                + 14 * (n1 + n3) * num_classes              # softmax / KL elementwise passes
                + 10 * n3 * n1 + 6 * n3 * n3)               # ss softmax + selection masks
    transcendentals = int((3 * n1 + 2 * n3) * num_classes + 2 * n3 * n1 + 4 * (n1 + n3))
    bytes_accessed = int(sum(x.size * x.dtype.itemsize for x in operands) + 4 * 4)

    # Everything stays resident in VMEM for the single launch; leave headroom but stay within
    # v7x's 64 MiB physical VMEM.  TODO(synk): tile the class dim (online LSE) for very large C.
    work_bytes = 16 * ((n1 + n3) * num_classes + (n1 + n3) * feat_dim + n3 * n1 + n3 * n3)
    vmem_limit = int(min(64 * 2 ** 20, max(32 * 2 ** 20, 2 * bytes_accessed + work_bytes)))

    vmem = pl.BlockSpec(memory_space=pltpu.MemorySpace.VMEM)
    scalar_out = jax.ShapeDtypeStruct((1, 1), jnp.float32)
    ce, kl, ss, tf = pl.pallas_call(
        functools.partial(_sskd_loss_kernel,
                          kl_temp=float(kl_temp), ss_temp=float(ss_temp), tf_temp=float(tf_temp),
                          ss_ratio=float(ss_ratio), tf_ratio=float(tf_ratio)),
        out_shape=(scalar_out,) * 4,
        in_specs=[vmem] * 10,
        out_specs=(vmem,) * 4,
        compiler_params=pltpu.CompilerParams(vmem_limit_bytes=vmem_limit),
        cost_estimate=pl.CostEstimate(flops=flops, transcendentals=transcendentals,
                                      bytes_accessed=bytes_accessed),
    )(*operands)
    return ce[0, 0], kl[0, 0], ss[0, 0], tf[0, 0]


class SSKDLoss:
    """JAX/Pallas port of torchdistill's SSKDLoss (forward only)."""

    def __init__(self, student_linear_module_path, teacher_linear_module_path,
                 student_ss_module_path, teacher_ss_module_path,
                 kl_temp, ss_temp, tf_temp, ss_ratio, tf_ratio,
                 student_linear_module_io='output', teacher_linear_module_io='output',
                 student_ss_module_io='output', teacher_ss_module_io='output',
                 loss_weights=None, reduction='batchmean', **kwargs):
        if reduction != 'batchmean':
            # TODO(synk): only the default reduction='batchmean' (CE 'mean' / KLDiv 'batchmean')
            # is implemented here.
            raise NotImplementedError("only reduction='batchmean' is supported")
        self.loss_weights = [1.0, 1.0, 1.0, 1.0] if loss_weights is None else list(loss_weights)
        self.student_linear_module_path = student_linear_module_path
        self.student_linear_module_io = student_linear_module_io
        self.teacher_linear_module_path = teacher_linear_module_path
        self.teacher_linear_module_io = teacher_linear_module_io
        self.student_ss_module_path = student_ss_module_path
        self.student_ss_module_io = student_ss_module_io
        self.teacher_ss_module_path = teacher_ss_module_path
        self.teacher_ss_module_io = teacher_ss_module_io
        self._loss_fn = jax.jit(functools.partial(
            sskd_component_losses,
            kl_temp=float(kl_temp), ss_temp=float(ss_temp), tf_temp=float(tf_temp),
            ss_ratio=float(ss_ratio), tf_ratio=float(tf_ratio)))

    def __call__(self, student_io_dict, teacher_io_dict, targets, *args, **kwargs):
        s_lin = student_io_dict[self.student_linear_module_path][self.student_linear_module_io]
        t_lin = teacher_io_dict[self.teacher_linear_module_path][self.teacher_linear_module_io]
        s_ss = student_io_dict[self.student_ss_module_path][self.student_ss_module_io]
        t_ss = teacher_io_dict[self.teacher_ss_module_path][self.teacher_ss_module_io]
        ce_loss, kl_loss, ss_loss, tf_loss = self._loss_fn(s_lin, t_lin, s_ss, t_ss, targets)
        total_loss = jnp.float32(0.0)
        for loss_weight, loss in zip(self.loss_weights, [ce_loss, kl_loss, ss_loss, tf_loss]):
            total_loss = total_loss + loss_weight * loss
        return total_loss


# ---------------------------------------------------------------------------
# pure-JAX reference (mirrors the PyTorch forward; used only for validation)
# ---------------------------------------------------------------------------
def _reference_sskd_components(s_lin, t_lin, s_ss, t_ss, targets, *, kl_temp, ss_temp, tf_temp,
                               ss_ratio, tf_ratio):
    b = s_lin.shape[0]
    n1, n3 = b // 4, b - b // 4
    idx = np.arange(b)
    normal_idx, aug_idx = idx[idx % 4 == 0], idx[idx % 4 != 0]
    s_norm, t_norm = s_lin[normal_idx], t_lin[normal_idx]
    s_aug, t_aug = s_lin[aug_idx], t_lin[aug_idx]

    ce = -jnp.mean(jnp.take_along_axis(jax.nn.log_softmax(s_norm, axis=1),
                                       targets[:, None], axis=1))

    p_t = jax.nn.softmax(t_norm / kl_temp, axis=1)
    kl = (kl_temp ** 2) * jnp.sum(
        p_t * (jnp.log(p_t) - jax.nn.log_softmax(s_norm / kl_temp, axis=1))) / n1

    def selection_mask(ranks, ratio):
        pos = jnp.argsort(jnp.argsort(ranks))
        wrong_num = jnp.sum(ranks != 0)
        k = (ranks.shape[0] - wrong_num).astype(jnp.float32) \
            + jnp.floor(wrong_num.astype(jnp.float32) * ratio)
        k = jnp.maximum(k, 1.0)   # same degenerate-case guard as the kernel
        return (pos.astype(jnp.float32) < k).astype(jnp.float32), k

    def ranks_of_target(scores, tgt_cols):
        order = jnp.argsort(-scores, axis=1)
        return jnp.argmax((order == tgt_cols[:, None]).astype(jnp.int32), axis=1)

    # TF
    aug_know = jax.nn.softmax(t_aug / tf_temp, axis=1)
    tf_mask, tf_k = selection_mask(
        ranks_of_target(aug_know, jnp.repeat(targets, 3)[:n3]), tf_ratio)
    tf_rows = jnp.sum(aug_know * (jnp.log(aug_know)
                                  - jax.nn.log_softmax(s_aug / tf_temp, axis=1)), axis=1)
    tf = (tf_temp ** 2) * jnp.sum(tf_mask * tf_rows) / tf_k

    # SS
    def cos_mat(aug, norm, eps=1e-8):
        denom = jnp.sqrt(jnp.sum(aug * aug, axis=1, keepdims=True)
                         * jnp.sum(norm * norm, axis=1)[None, :])
        return (aug @ norm.T) / jnp.maximum(denom, eps)

    s_cos = cos_mat(s_ss[aug_idx], s_ss[normal_idx])
    t_cos = cos_mat(t_ss[aug_idx], t_ss[normal_idx])
    ss_mask, ss_k = selection_mask(
        ranks_of_target(t_cos, jnp.repeat(jnp.arange(n1), 3)[:n3]), ss_ratio)
    p_t_cos = jax.nn.softmax(t_cos / ss_temp, axis=1)
    ss_rows = jnp.sum(p_t_cos * (jnp.log(p_t_cos)
                                 - jax.nn.log_softmax(s_cos / ss_temp, axis=1)), axis=1)
    ss = (ss_temp ** 2) * jnp.sum(ss_mask * ss_rows) / ss_k
    return ce, kl, ss, tf


if __name__ == "__main__":
    key = jax.random.PRNGKey(0)
    k1, k2, k3, k4, k5 = jax.random.split(key, 5)

    batch_size, num_classes, feat_dim = 16, 32, 64      # batch = 4 x (1 normal + 3 augmented)
    n1 = batch_size // 4

    s_lin = jax.random.normal(k1, (batch_size, num_classes), dtype=jnp.float32)
    t_lin = jax.random.normal(k2, (batch_size, num_classes), dtype=jnp.float32)
    s_ss = jax.random.normal(k3, (batch_size, feat_dim), dtype=jnp.float32)
    t_ss = jax.random.normal(k4, (batch_size, feat_dim), dtype=jnp.float32)
    targets = jax.random.randint(k5, (n1,), 0, num_classes, dtype=jnp.int32)

    student_io_dict = {'model.fc': {'output': s_lin}, 'ss_module': {'output': s_ss}}
    teacher_io_dict = {'model.fc': {'output': t_lin}, 'ss_module': {'output': t_ss}}

    hparams = dict(kl_temp=4.0, ss_temp=0.5, tf_temp=4.0, ss_ratio=0.75, tf_ratio=1.0)
    loss_weights = [1.0, 0.9, 10.0, 2.7]   # order: [ce, kl, ss, tf]
    criterion = SSKDLoss(
        student_linear_module_path='model.fc', teacher_linear_module_path='model.fc',
        student_ss_module_path='ss_module', teacher_ss_module_path='ss_module',
        loss_weights=loss_weights, reduction='batchmean', **hparams)

    total = jax.block_until_ready(criterion(student_io_dict, teacher_io_dict, targets))

    ref_components = _reference_sskd_components(s_lin, t_lin, s_ss, t_ss, targets, **hparams)
    ref_total = sum(w * l for w, l in zip(loss_weights, ref_components))
    assert jnp.allclose(total, ref_total, rtol=2e-3, atol=2e-3), (total, ref_total)

    print("KERNEL_OK")
</pallas_src>

<mosaic_0001>
module attributes {stable_mosaic.version = 11 : i64} {
  func.func @_sskd_loss_kernel(%arg0: memref<4x32xf32, #tpu.memory_space<vmem>>, %arg1: memref<4x32xf32, #tpu.memory_space<vmem>>, %arg2: memref<12x32xf32, #tpu.memory_space<vmem>>, %arg3: memref<12x32xf32, #tpu.memory_space<vmem>>, %arg4: memref<4x64xf32, #tpu.memory_space<vmem>>, %arg5: memref<12x64xf32, #tpu.memory_space<vmem>>, %arg6: memref<4x64xf32, #tpu.memory_space<vmem>>, %arg7: memref<12x64xf32, #tpu.memory_space<vmem>>, %arg8: memref<4x1xi32, #tpu.memory_space<vmem>>, %arg9: memref<12x1xi32, #tpu.memory_space<vmem>>, %arg10: memref<1x1xf32, #tpu.memory_space<vmem>>, %arg11: memref<1x1xf32, #tpu.memory_space<vmem>>, %arg12: memref<1x1xf32, #tpu.memory_space<vmem>>, %arg13: memref<1x1xf32, #tpu.memory_space<vmem>>) attributes {dimension_semantics = [], scalar_prefetch = 0 : i64, scratch_operands = 0 : i64, tpu.core_type = #tpu.core_type<tc>} {
    %c0 = arith.constant 0 : index
    %c0_0 = arith.constant 0 : index
    %0 = vector.load %arg0[%c0, %c0_0] : memref<4x32xf32, #tpu.memory_space<vmem>>, vector<4x32xf32>
    %c0_1 = arith.constant 0 : index
    %c0_2 = arith.constant 0 : index
    %1 = vector.load %arg1[%c0_1, %c0_2] : memref<4x32xf32, #tpu.memory_space<vmem>>, vector<4x32xf32>
    %c0_3 = arith.constant 0 : index
    %c0_4 = arith.constant 0 : index
    %2 = vector.load %arg2[%c0_3, %c0_4] : memref<12x32xf32, #tpu.memory_space<vmem>>, vector<12x32xf32>
    %c0_5 = arith.constant 0 : index
    %c0_6 = arith.constant 0 : index
    %3 = vector.load %arg3[%c0_5, %c0_6] : memref<12x32xf32, #tpu.memory_space<vmem>>, vector<12x32xf32>
    %c0_7 = arith.constant 0 : index
    %c0_8 = arith.constant 0 : index
    %4 = vector.load %arg8[%c0_7, %c0_8] : memref<4x1xi32, #tpu.memory_space<vmem>>, vector<4x1xi32>
    %5 = tpu.iota {dimensions = array<i32: 1>} : vector<4x32xi32>
    %cst = arith.constant dense<0xFF800000> : vector<4xf32>
    %6 = vector.multi_reduction <maximumf>, %0, %cst [1] : vector<4x32xf32> to vector<4xf32>
    %7 = vector.shape_cast %6 : vector<4xf32> to vector<4x1xf32>
    %8 = vector.broadcast %7 : vector<4x1xf32> to vector<4x32xf32>
    %9 = arith.subf %0, %8 : vector<4x32xf32>
    %10 = math.exp %9 : vector<4x32xf32>
    %cst_9 = arith.constant dense<0.000000e+00> : vector<4xf32>
    %11 = vector.multi_reduction <add>, %10, %cst_9 [1] : vector<4x32xf32> to vector<4xf32>
    %12 = vector.shape_cast %11 : vector<4xf32> to vector<4x1xf32>
    %13 = math.log %12 : vector<4x1xf32>
    %14 = arith.addf %7, %13 : vector<4x1xf32>
    %15 = vector.broadcast %4 : vector<4x1xi32> to vector<4x32xi32>
    %16 = arith.cmpi eq, %5, %15 : vector<4x32xi32>
    %cst_10 = arith.constant 0.000000e+00 : f32
    %17 = vector.broadcast %cst_10 : f32 to vector<4x32xf32>
    %18 = arith.select %16, %0, %17 : vector<4x32xi1>, vector<4x32xf32>
    %cst_11 = arith.constant dense<0.000000e+00> : vector<4xf32>
    %19 = vector.multi_reduction <add>, %18, %cst_11 [1] : vector<4x32xf32> to vector<4xf32>
    %20 = vector.shape_cast %19 : vector<4xf32> to vector<4x1xf32>
    %21 = arith.subf %14, %20 : vector<4x1xf32>
    %22 = vector.shape_cast %21 : vector<4x1xf32> to vector<1x4x1xf32>
    %cst_12 = arith.constant dense<0.000000e+00> : vector<1xf32>
    %23 = vector.multi_reduction <add>, %22, %cst_12 [1, 2] : vector<1x4x1xf32> to vector<1xf32>
    %24 = vector.shape_cast %23 : vector<1xf32> to vector<1x1x1xf32>
    %25 = vector.extract %24[0, 0, 0] : f32 from vector<1x1x1xf32>
    %cst_13 = arith.constant 4.000000e+00 : f32
    %26 = arith.divf %25, %cst_13 : f32
    %cst_14 = arith.constant 2.500000e-01 : f32
    %27 = vector.broadcast %cst_14 : f32 to vector<4x32xf32>
    %28 = arith.mulf %0, %27 : vector<4x32xf32>
    %cst_15 = arith.constant 2.500000e-01 : f32
    %29 = vector.broadcast %cst_15 : f32 to vector<4x32xf32>
    %30 = arith.mulf %1, %29 : vector<4x32xf32>
    %cst_16 = arith.constant dense<0xFF800000> : vector<4xf32>
    %31 = vector.multi_reduction <maximumf>, %28, %cst_16 [1] : vector<4x32xf32> to vector<4xf32>
    %32 = vector.shape_cast %31 : vector<4xf32> to vector<4x1xf32>
    %33 = vector.broadcast %32 : vector<4x1xf32> to vector<4x32xf32>
    %34 = arith.subf %28, %33 : vector<4x32xf32>
    %cst_17 = arith.constant dense<0xFF800000> : vector<4xf32>
    %35 = vector.multi_reduction <maximumf>, %30, %cst_17 [1] : vector<4x32xf32> to vector<4xf32>
    %36 = vector.shape_cast %35 : vector<4xf32> to vector<4x1xf32>
    %37 = vector.broadcast %36 : vector<4x1xf32> to vector<4x32xf32>
    %38 = arith.subf %30, %37 : vector<4x32xf32>
    %39 = math.exp %34 : vector<4x32xf32>
    %40 = math.exp %38 : vector<4x32xf32>
    %cst_18 = arith.constant dense<0.000000e+00> : vector<4xf32>
    %41 = vector.multi_reduction <add>, %39, %cst_18 [1] : vector<4x32xf32> to vector<4xf32>
    %42 = vector.shape_cast %41 : vector<4xf32> to vector<4x1xf32>
    %cst_19 = arith.constant dense<0.000000e+00> : vector<4xf32>
    %43 = vector.multi_reduction <add>, %40, %cst_19 [1] : vector<4x32xf32> to vector<4xf32>
    %44 = vector.shape_cast %43 : vector<4xf32> to vector<4x1xf32>
    %45 = arith.subf %38, %34 : vector<4x32xf32>
    %46 = arith.mulf %40, %45 : vector<4x32xf32>
    %cst_20 = arith.constant dense<0.000000e+00> : vector<4xf32>
    %47 = vector.multi_reduction <add>, %46, %cst_20 [1] : vector<4x32xf32> to vector<4xf32>
    %48 = vector.shape_cast %47 : vector<4xf32> to vector<4x1xf32>
    %49 = arith.divf %48, %44 : vector<4x1xf32>
    %50 = math.log %42 : vector<4x1xf32>
    %51 = arith.addf %49, %50 : vector<4x1xf32>
    %52 = math.log %44 : vector<4x1xf32>
    %53 = arith.subf %51, %52 : vector<4x1xf32>
    %54 = vector.shape_cast %53 : vector<4x1xf32> to vector<1x4x1xf32>
    %cst_21 = arith.constant dense<0.000000e+00> : vector<1xf32>
    %55 = vector.multi_reduction <add>, %54, %cst_21 [1, 2] : vector<1x4x1xf32> to vector<1xf32>
    %56 = vector.shape_cast %55 : vector<1xf32> to vector<1x1x1xf32>
    %57 = vector.extract %56[0, 0, 0] : f32 from vector<1x1x1xf32>
    %cst_22 = arith.constant 1.600000e+01 : f32
    %58 = arith.mulf %cst_22, %57 : f32
    %cst_23 = arith.constant 4.000000e+00 : f32
    %59 = arith.divf %58, %cst_23 : f32
    %c0_24 = arith.constant 0 : index
    %c0_25 = arith.constant 0 : index
    %60 = vector.load %arg9[%c0_24, %c0_25] : memref<12x1xi32, #tpu.memory_space<vmem>>, vector<12x1xi32>
    %61 = tpu.iota {dimensions = array<i32: 1>} : vector<12x32xi32>
    %62 = vector.broadcast %60 : vector<12x1xi32> to vector<12x32xi32>
    %63 = arith.cmpi eq, %61, %62 : vector<12x32xi32>
    %cst_26 = arith.constant 0.000000e+00 : f32
    %64 = vector.broadcast %cst_26 : f32 to vector<12x32xf32>
    %65 = arith.select %63, %3, %64 : vector<12x32xi1>, vector<12x32xf32>
    %cst_27 = arith.constant dense<0.000000e+00> : vector<12xf32>
    %66 = vector.multi_reduction <add>, %65, %cst_27 [1] : vector<12x32xf32> to vector<12xf32>
    %67 = vector.shape_cast %66 : vector<12xf32> to vector<12x1xf32>
    %68 = vector.broadcast %67 : vector<12x1xf32> to vector<12x32xf32>
    %69 = arith.cmpf ogt, %3, %68 : vector<12x32xf32>
    %70 = arith.extui %69 : vector<12x32xi1> to vector<12x32xi32>
    %71 = arith.sitofp %70 : vector<12x32xi32> to vector<12x32xf32>
    %cst_28 = arith.constant dense<0.000000e+00> : vector<12xf32>
    %72 = vector.multi_reduction <add>, %71, %cst_28 [1] : vector<12x32xf32> to vector<12xf32>
    %73 = vector.shape_cast %72 : vector<12xf32> to vector<12x1xf32>
    %cst_29 = arith.constant 1.000000e+00 : f32
    %74 = vector.broadcast %cst_29 : f32 to vector<1x32xf32>
    %cst_30 = arith.constant dense<0.000000e+00> : vector<1x12xf32>
    %75 = tpu.matmul %74, %71, %cst_30 {dimension_numbers = #tpu.dot_dimension_numbers<[1], [1], [0], [0], [0, 0, 1, 0], [], []>} : vector<1x32xf32>, vector<12x32xf32>, vector<1x12xf32> -> vector<1x12xf32>
    %cst_31 = arith.constant 0.000000e+00 : f32
    %76 = vector.broadcast %cst_31 : f32 to vector<12x1xf32>
    %77 = arith.cmpf oeq, %73, %76 : vector<12x1xf32>
    %78 = arith.extui %77 : vector<12x1xi1> to vector<12x1xi32>
    %79 = arith.sitofp %78 : vector<12x1xi32> to vector<12x1xf32>
    %80 = vector.shape_cast %79 : vector<12x1xf32> to vector<1x12x1xf32>
    %cst_32 = arith.constant dense<0.000000e+00> : vector<1xf32>
    %81 = vector.multi_reduction <add>, %80, %cst_32 [1, 2] : vector<1x12x1xf32> to vector<1xf32>
    %82 = vector.shape_cast %81 : vector<1xf32> to vector<1x1x1xf32>
    %83 = vector.extract %82[0, 0, 0] : f32 from vector<1x1x1xf32>
    %cst_33 = arith.constant 1.200000e+01 : f32
    %84 = arith.subf %cst_33, %83 : f32
    %cst_34 = arith.constant 1.000000e+00 : f32
    %85 = arith.mulf %84, %cst_34 : f32
    %86 = math.floor %85 : f32
    %87 = arith.addf %83, %86 : f32
    %cst_35 = arith.constant 1.000000e+00 : f32
    %88 = arith.maximumf %87, %cst_35 : f32
    %89 = tpu.iota {dimensions = array<i32: 0>} : vector<12x12xi32>
    %90 = tpu.iota {dimensions = array<i32: 1>} : vector<12x12xi32>
    %91 = vector.broadcast %75 : vector<1x12xf32> to vector<12x12xf32>
    %92 = vector.broadcast %73 : vector<12x1xf32> to vector<12x12xf32>
    %93 = arith.cmpf olt, %91, %92 : vector<12x12xf32>
    %94 = vector.broadcast %75 : vector<1x12xf32> to vector<12x12xf32>
    %95 = vector.broadcast %73 : vector<12x1xf32> to vector<12x12xf32>
    %96 = arith.cmpf oeq, %94, %95 : vector<12x12xf32>
    %97 = arith.cmpi slt, %90, %89 : vector<12x12xi32>
    %98 = arith.andi %96, %97 : vector<12x12xi1>
    %99 = arith.ori %93, %98 : vector<12x12xi1>
    %100 = arith.extui %99 : vector<12x12xi1> to vector<12x12xi32>
    %101 = arith.sitofp %100 : vector<12x12xi32> to vector<12x12xf32>
    %cst_36 = arith.constant dense<0.000000e+00> : vector<12xf32>
    %102 = vector.multi_reduction <add>, %101, %cst_36 [1] : vector<12x12xf32> to vector<12xf32>
    %103 = vector.shape_cast %102 : vector<12xf32> to vector<12x1xf32>
    %104 = vector.broadcast %88 : f32 to vector<12x1xf32>
    %105 = arith.cmpf olt, %103, %104 : vector<12x1xf32>
    %106 = arith.extui %105 : vector<12x1xi1> to vector<12x1xi32>
    %107 = arith.sitofp %106 : vector<12x1xi32> to vector<12x1xf32>
    %cst_37 = arith.constant 2.500000e-01 : f32
    %108 = vector.broadcast %cst_37 : f32 to vector<12x32xf32>
    %109 = arith.mulf %2, %108 : vector<12x32xf32>
    %cst_38 = arith.constant 2.500000e-01 : f32
    %110 = vector.broadcast %cst_38 : f32 to vector<12x32xf32>
    %111 = arith.mulf %3, %110 : vector<12x32xf32>
    %cst_39 = arith.constant dense<0xFF800000> : vector<12xf32>
    %112 = vector.multi_reduction <maximumf>, %109, %cst_39 [1] : vector<12x32xf32> to vector<12xf32>
    %113 = vector.shape_cast %112 : vector<12xf32> to vector<12x1xf32>
    %114 = vector.broadcast %113 : vector<12x1xf32> to vector<12x32xf32>
    %115 = arith.subf %109, %114 : vector<12x32xf32>
    %cst_40 = arith.constant dense<0xFF800000> : vector<12xf32>
    %116 = vector.multi_reduction <maximumf>, %111, %cst_40 [1] : vector<12x32xf32> to vector<12xf32>
    %117 = vector.shape_cast %116 : vector<12xf32> to vector<12x1xf32>
    %118 = vector.broadcast %117 : vector<12x1xf32> to vector<12x32xf32>
    %119 = arith.subf %111, %118 : vector<12x32xf32>
    %120 = math.exp %115 : vector<12x32xf32>
    %121 = math.exp %119 : vector<12x32xf32>
    %cst_41 = arith.constant dense<0.000000e+00> : vector<12xf32>
    %122 = vector.multi_reduction <add>, %120, %cst_41 [1] : vector<12x32xf32> to vector<12xf32>
    %123 = vector.shape_cast %122 : vector<12xf32> to vector<12x1xf32>
    %cst_42 = arith.constant dense<0.000000e+00> : vector<12xf32>
    %124 = vector.multi_reduction <add>, %121, %cst_42 [1] : vector<12x32xf32> to vector<12xf32>
    %125 = vector.shape_cast %124 : vector<12xf32> to vector<12x1xf32>
    %126 = arith.subf %119, %115 : vector<12x32xf32>
    %127 = arith.mulf %121, %126 : vector<12x32xf32>
    %cst_43 = arith.constant dense<0.000000e+00> : vector<12xf32>
    %128 = vector.multi_reduction <add>, %127, %cst_43 [1] : vector<12x32xf32> to vector<12xf32>
    %129 = vector.shape_cast %128 : vector<12xf32> to vector<12x1xf32>
    %130 = arith.divf %129, %125 : vector<12x1xf32>
    %131 = math.log %123 : vector<12x1xf32>
    %132 = arith.addf %130, %131 : vector<12x1xf32>
    %133 = math.log %125 : vector<12x1xf32>
    %134 = arith.subf %132, %133 : vector<12x1xf32>
    %135 = arith.mulf %107, %134 : vector<12x1xf32>
    %136 = vector.shape_cast %135 : vector<12x1xf32> to vector<1x12x1xf32>
    %cst_44 = arith.constant dense<0.000000e+00> : vector<1xf32>
    %137 = vector.multi_reduction <add>, %136, %cst_44 [1, 2] : vector<1x12x1xf32> to vector<1xf32>
    %138 = vector.shape_cast %137 : vector<1xf32> to vector<1x1x1xf32>
    %139 = vector.extract %138[0, 0, 0] : f32 from vector<1x1x1xf32>
    %cst_45 = arith.constant 1.600000e+01 : f32
    %140 = arith.mulf %cst_45, %139 : f32
    %141 = arith.divf %140, %88 : f32
    %c0_46 = arith.constant 0 : index
    %c0_47 = arith.constant 0 : index
    %142 = vector.load %arg5[%c0_46, %c0_47] : memref<12x64xf32, #tpu.memory_space<vmem>>, vector<12x64xf32>
    %c0_48 = arith.constant 0 : index
    %c0_49 = arith.constant 0 : index
    %143 = vector.load %arg4[%c0_48, %c0_49] : memref<4x64xf32, #tpu.memory_space<vmem>>, vector<4x64xf32>
    %144 = arith.mulf %142, %142 : vector<12x64xf32>
    %cst_50 = arith.constant dense<0.000000e+00> : vector<12xf32>
    %145 = vector.multi_reduction <add>, %144, %cst_50 [1] : vector<12x64xf32> to vector<12xf32>
    %146 = vector.shape_cast %145 : vector<12xf32> to vector<12x1xf32>
    %cst_51 = arith.constant 1.000000e-16 : f32
    %147 = vector.broadcast %cst_51 : f32 to vector<12x1xf32>
    %148 = arith.maximumf %146, %147 : vector<12x1xf32>
    %149 = math.rsqrt %148 : vector<12x1xf32>
    %150 = vector.broadcast %149 : vector<12x1xf32> to vector<12x64xf32>
    %151 = arith.mulf %142, %150 : vector<12x64xf32>
    %152 = arith.mulf %143, %143 : vector<4x64xf32>
    %cst_52 = arith.constant dense<0.000000e+00> : vector<4xf32>
    %153 = vector.multi_reduction <add>, %152, %cst_52 [1] : vector<4x64xf32> to vector<4xf32>
    %154 = vector.shape_cast %153 : vector<4xf32> to vector<4x1xf32>
    %cst_53 = arith.constant 1.000000e-16 : f32
    %155 = vector.broadcast %cst_53 : f32 to vector<4x1xf32>
    %156 = arith.maximumf %154, %155 : vector<4x1xf32>
    %157 = math.rsqrt %156 : vector<4x1xf32>
    %158 = vector.broadcast %157 : vector<4x1xf32> to vector<4x64xf32>
    %159 = arith.mulf %143, %158 : vector<4x64xf32>
    %cst_54 = arith.constant dense<0.000000e+00> : vector<12x4xf32>
    %160 = tpu.matmul %151, %159, %cst_54 {dimension_numbers = #tpu.dot_dimension_numbers<[1], [1], [0], [0], [0, 0, 1, 0], [], []>} : vector<12x64xf32>, vector<4x64xf32>, vector<12x4xf32> -> vector<12x4xf32>
    %c0_55 = arith.constant 0 : index
    %c0_56 = arith.constant 0 : index
    %161 = vector.load %arg7[%c0_55, %c0_56] : memref<12x64xf32, #tpu.memory_space<vmem>>, vector<12x64xf32>
    %c0_57 = arith.constant 0 : index
    %c0_58 = arith.constant 0 : index
    %162 = vector.load %arg6[%c0_57, %c0_58] : memref<4x64xf32, #tpu.memory_space<vmem>>, vector<4x64xf32>
    %163 = arith.mulf %161, %161 : vector<12x64xf32>
    %cst_59 = arith.constant dense<0.000000e+00> : vector<12xf32>
    %164 = vector.multi_reduction <add>, %163, %cst_59 [1] : vector<12x64xf32> to vector<12xf32>
    %165 = vector.shape_cast %164 : vector<12xf32> to vector<12x1xf32>
    %cst_60 = arith.constant 1.000000e-16 : f32
    %166 = vector.broadcast %cst_60 : f32 to vector<12x1xf32>
    %167 = arith.maximumf %165, %166 : vector<12x1xf32>
    %168 = math.rsqrt %167 : vector<12x1xf32>
    %169 = vector.broadcast %168 : vector<12x1xf32> to vector<12x64xf32>
    %170 = arith.mulf %161, %169 : vector<12x64xf32>
    %171 = arith.mulf %162, %162 : vector<4x64xf32>
    %cst_61 = arith.constant dense<0.000000e+00> : vector<4xf32>
    %172 = vector.multi_reduction <add>, %171, %cst_61 [1] : vector<4x64xf32> to vector<4xf32>
    %173 = vector.shape_cast %172 : vector<4xf32> to vector<4x1xf32>
    %cst_62 = arith.constant 1.000000e-16 : f32
    %174 = vector.broadcast %cst_62 : f32 to vector<4x1xf32>
    %175 = arith.maximumf %173, %174 : vector<4x1xf32>
    %176 = math.rsqrt %175 : vector<4x1xf32>
    %177 = vector.broadcast %176 : vector<4x1xf32> to vector<4x64xf32>
    %178 = arith.mulf %162, %177 : vector<4x64xf32>
    %cst_63 = arith.constant dense<0.000000e+00> : vector<12x4xf32>
    %179 = tpu.matmul %170, %178, %cst_63 {dimension_numbers = #tpu.dot_dimension_numbers<[1], [1], [0], [0], [0, 0, 1, 0], [], []>} : vector<12x64xf32>, vector<4x64xf32>, vector<12x4xf32> -> vector<12x4xf32>
    %180 = tpu.iota {dimensions = array<i32: 0>} : vector<12x4xi32>
    %181 = tpu.iota {dimensions = array<i32: 1>} : vector<12x4xi32>
    %c3_i32 = arith.constant 3 : i32
    %182 = vector.broadcast %c3_i32 : i32 to vector<12x4xi32>
    %183 = arith.muli %182, %181 : vector<12x4xi32>
    %184 = arith.cmpi sge, %180, %183 : vector<12x4xi32>
    %c3_i32_64 = arith.constant 3 : i32
    %185 = vector.broadcast %c3_i32_64 : i32 to vector<12x4xi32>
    %186 = arith.muli %185, %181 : vector<12x4xi32>
    %c3_i32_65 = arith.constant 3 : i32
    %187 = vector.broadcast %c3_i32_65 : i32 to vector<12x4xi32>
    %188 = arith.addi %186, %187 : vector<12x4xi32>
    %189 = arith.cmpi slt, %180, %188 : vector<12x4xi32>
    %190 = arith.andi %184, %189 : vector<12x4xi1>
    %cst_66 = arith.constant 0.000000e+00 : f32
    %191 = vector.broadcast %cst_66 : f32 to vector<12x4xf32>
    %192 = arith.select %190, %179, %191 : vector<12x4xi1>, vector<12x4xf32>
    %cst_67 = arith.constant dense<0.000000e+00> : vector<12xf32>
    %193 = vector.multi_reduction <add>, %192, %cst_67 [1] : vector<12x4xf32> to vector<12xf32>
    %194 = vector.shape_cast %193 : vector<12xf32> to vector<12x1xf32>
    %195 = vector.broadcast %194 : vector<12x1xf32> to vector<12x4xf32>
    %196 = arith.cmpf ogt, %179, %195 : vector<12x4xf32>
    %197 = arith.extui %196 : vector<12x4xi1> to vector<12x4xi32>
    %198 = arith.sitofp %197 : vector<12x4xi32> to vector<12x4xf32>
    %cst_68 = arith.constant dense<0.000000e+00> : vector<12xf32>
    %199 = vector.multi_reduction <add>, %198, %cst_68 [1] : vector<12x4xf32> to vector<12xf32>
    %200 = vector.shape_cast %199 : vector<12xf32> to vector<12x1xf32>
    %cst_69 = arith.constant 1.000000e+00 : f32
    %201 = vector.broadcast %cst_69 : f32 to vector<1x4xf32>
    %cst_70 = arith.constant dense<0.000000e+00> : vector<1x12xf32>
    %202 = tpu.matmul %201, %198, %cst_70 {dimension_numbers = #tpu.dot_dimension_numbers<[1], [1], [0], [0], [0, 0, 1, 0], [], []>} : vector<1x4xf32>, vector<12x4xf32>, vector<1x12xf32> -> vector<1x12xf32>
    %cst_71 = arith.constant 0.000000e+00 : f32
    %203 = vector.broadcast %cst_71 : f32 to vector<12x1xf32>
    %204 = arith.cmpf oeq, %200, %203 : vector<12x1xf32>
    %205 = arith.extui %204 : vector<12x1xi1> to vector<12x1xi32>
    %206 = arith.sitofp %205 : vector<12x1xi32> to vector<12x1xf32>
    %207 = vector.shape_cast %206 : vector<12x1xf32> to vector<1x12x1xf32>
    %cst_72 = arith.constant dense<0.000000e+00> : vector<1xf32>
    %208 = vector.multi_reduction <add>, %207, %cst_72 [1, 2] : vector<1x12x1xf32> to vector<1xf32>
    %209 = vector.shape_cast %208 : vector<1xf32> to vector<1x1x1xf32>
    %210 = vector.extract %209[0, 0, 0] : f32 from vector<1x1x1xf32>
    %cst_73 = arith.constant 1.200000e+01 : f32
    %211 = arith.subf %cst_73, %210 : f32
    %cst_74 = arith.constant 7.500000e-01 : f32
    %212 = arith.mulf %211, %cst_74 : f32
    %213 = math.floor %212 : f32
    %214 = arith.addf %210, %213 : f32
    %cst_75 = arith.constant 1.000000e+00 : f32
    %215 = arith.maximumf %214, %cst_75 : f32
    %216 = tpu.iota {dimensions = array<i32: 0>} : vector<12x12xi32>
    %217 = tpu.iota {dimensions = array<i32: 1>} : vector<12x12xi32>
    %218 = vector.broadcast %202 : vector<1x12xf32> to vector<12x12xf32>
    %219 = vector.broadcast %200 : vector<12x1xf32> to vector<12x12xf32>
    %220 = arith.cmpf olt, %218, %219 : vector<12x12xf32>
    %221 = vector.broadcast %202 : vector<1x12xf32> to vector<12x12xf32>
    %222 = vector.broadcast %200 : vector<12x1xf32> to vector<12x12xf32>
    %223 = arith.cmpf oeq, %221, %222 : vector<12x12xf32>
    %224 = arith.cmpi slt, %217, %216 : vector<12x12xi32>
    %225 = arith.andi %223, %224 : vector<12x12xi1>
    %226 = arith.ori %220, %225 : vector<12x12xi1>
    %227 = arith.extui %226 : vector<12x12xi1> to vector<12x12xi32>
    %228 = arith.sitofp %227 : vector<12x12xi32> to vector<12x12xf32>
    %cst_76 = arith.constant dense<0.000000e+00> : vector<12xf32>
    %229 = vector.multi_reduction <add>, %228, %cst_76 [1] : vector<12x12xf32> to vector<12xf32>
    %230 = vector.shape_cast %229 : vector<12xf32> to vector<12x1xf32>
    %231 = vector.broadcast %215 : f32 to vector<12x1xf32>
    %232 = arith.cmpf olt, %230, %231 : vector<12x1xf32>
    %233 = arith.extui %232 : vector<12x1xi1> to vector<12x1xi32>
    %234 = arith.sitofp %233 : vector<12x1xi32> to vector<12x1xf32>
    %cst_77 = arith.constant 2.000000e+00 : f32
    %235 = vector.broadcast %cst_77 : f32 to vector<12x4xf32>
    %236 = arith.mulf %160, %235 : vector<12x4xf32>
    %cst_78 = arith.constant 2.000000e+00 : f32
    %237 = vector.broadcast %cst_78 : f32 to vector<12x4xf32>
    %238 = arith.mulf %179, %237 : vector<12x4xf32>
    %cst_79 = arith.constant dense<0xFF800000> : vector<12xf32>
    %239 = vector.multi_reduction <maximumf>, %236, %cst_79 [1] : vector<12x4xf32> to vector<12xf32>
    %240 = vector.shape_cast %239 : vector<12xf32> to vector<12x1xf32>
    %241 = vector.broadcast %240 : vector<12x1xf32> to vector<12x4xf32>
    %242 = arith.subf %236, %241 : vector<12x4xf32>
    %cst_80 = arith.constant dense<0xFF800000> : vector<12xf32>
    %243 = vector.multi_reduction <maximumf>, %238, %cst_80 [1] : vector<12x4xf32> to vector<12xf32>
    %244 = vector.shape_cast %243 : vector<12xf32> to vector<12x1xf32>
    %245 = vector.broadcast %244 : vector<12x1xf32> to vector<12x4xf32>
    %246 = arith.subf %238, %245 : vector<12x4xf32>
    %247 = math.exp %242 : vector<12x4xf32>
    %248 = math.exp %246 : vector<12x4xf32>
    %cst_81 = arith.constant dense<0.000000e+00> : vector<12xf32>
    %249 = vector.multi_reduction <add>, %247, %cst_81 [1] : vector<12x4xf32> to vector<12xf32>
    %250 = vector.shape_cast %249 : vector<12xf32> to vector<12x1xf32>
    %cst_82 = arith.constant dense<0.000000e+00> : vector<12xf32>
    %251 = vector.multi_reduction <add>, %248, %cst_82 [1] : vector<12x4xf32> to vector<12xf32>
    %252 = vector.shape_cast %251 : vector<12xf32> to vector<12x1xf32>
    %253 = arith.subf %246, %242 : vector<12x4xf32>
    %254 = arith.mulf %248, %253 : vector<12x4xf32>
    %cst_83 = arith.constant dense<0.000000e+00> : vector<12xf32>
    %255 = vector.multi_reduction <add>, %254, %cst_83 [1] : vector<12x4xf32> to vector<12xf32>
    %256 = vector.shape_cast %255 : vector<12xf32> to vector<12x1xf32>
    %257 = arith.divf %256, %252 : vector<12x1xf32>
    %258 = math.log %250 : vector<12x1xf32>
    %259 = arith.addf %257, %258 : vector<12x1xf32>
    %260 = math.log %252 : vector<12x1xf32>
    %261 = arith.subf %259, %260 : vector<12x1xf32>
    %262 = arith.mulf %234, %261 : vector<12x1xf32>
    %263 = vector.shape_cast %262 : vector<12x1xf32> to vector<1x12x1xf32>
    %cst_84 = arith.constant dense<0.000000e+00> : vector<1xf32>
    %264 = vector.multi_reduction <add>, %263, %cst_84 [1, 2] : vector<1x12x1xf32> to vector<1xf32>
    %265 = vector.shape_cast %264 : vector<1xf32> to vector<1x1x1xf32>
    %266 = vector.extract %265[0, 0, 0] : f32 from vector<1x1x1xf32>
    %cst_85 = arith.constant 2.500000e-01 : f32
    %267 = arith.mulf %cst_85, %266 : f32
    %268 = arith.divf %267, %215 : f32
    %269 = vector.broadcast %26 : f32 to vector<1x1xf32>
    %c0_86 = arith.constant 0 : index
    %c0_87 = arith.constant 0 : index
    %270 = vector.load %arg10[%c0_86, %c0_87] : memref<1x1xf32, #tpu.memory_space<vmem>>, vector<1x1xf32>
    tpu.vector_store %arg10[%c0_86, %c0_87], %269 {strides = array<i32>} : memref<1x1xf32, #tpu.memory_space<vmem>>, vector<1x1xf32>,
    %271 = vector.broadcast %59 : f32 to vector<1x1xf32>
    %c0_88 = arith.constant 0 : index
    %c0_89 = arith.constant 0 : index
    %272 = vector.load %arg11[%c0_88, %c0_89] : memref<1x1xf32, #tpu.memory_space<vmem>>, vector<1x1xf32>
    tpu.vector_store %arg11[%c0_88, %c0_89], %271 {strides = array<i32>} : memref<1x1xf32, #tpu.memory_space<vmem>>, vector<1x1xf32>,
    %273 = vector.broadcast %268 : f32 to vector<1x1xf32>
    %c0_90 = arith.constant 0 : index
    %c0_91 = arith.constant 0 : index
    %274 = vector.load %arg12[%c0_90, %c0_91] : memref<1x1xf32, #tpu.memory_space<vmem>>, vector<1x1xf32>
    tpu.vector_store %arg12[%c0_90, %c0_91], %273 {strides = array<i32>} : memref<1x1xf32, #tpu.memory_space<vmem>>, vector<1x1xf32>,
    %275 = vector.broadcast %141 : f32 to vector<1x1xf32>
    %c0_92 = arith.constant 0 : index
    %c0_93 = arith.constant 0 : index
    %276 = vector.load %arg13[%c0_92, %c0_93] : memref<1x1xf32, #tpu.memory_space<vmem>>, vector<1x1xf32>
    tpu.vector_store %arg13[%c0_92, %c0_93], %275 {strides = array<i32>} : memref<1x1xf32, #tpu.memory_space<vmem>>, vector<1x1xf32>,
    return
  }
}

</mosaic_0001>

<llo_original>
// kernel: sskd_component_losses.1
$region0: #{sskd_component_losses.1}
  #allocation0 [shape = 'u32[]', space=smem, size = 0x4, offset = 0x4, fixed_abs, tag = 'smem constant byte address 0x4 - core index']
  #allocation1 [shape = 'u32[144,128]{1,0:T(1,128)}', space=vmem, size = 0x12000, scoped, tag = 'internal scratch']
  %s0 = inlined_call_operand.vmem [shape: f32[4,32], index: 0, kind: input, shape index: {}]
  %s1 = inlined_call_operand.vmem [shape: f32[4,32], index: 1, kind: input, shape index: {}]
  %s2 = inlined_call_operand.vmem [shape: f32[12,32], index: 2, kind: input, shape index: {}]
  %s3 = inlined_call_operand.vmem [shape: f32[12,32], index: 3, kind: input, shape index: {}]
  %s4 = inlined_call_operand.vmem [shape: f32[4,64], index: 4, kind: input, shape index: {}]
  %s5 = inlined_call_operand.vmem [shape: f32[12,64], index: 5, kind: input, shape index: {}]
  %s6 = inlined_call_operand.vmem [shape: f32[4,64], index: 6, kind: input, shape index: {}]
  %s7 = inlined_call_operand.vmem [shape: f32[12,64], index: 7, kind: input, shape index: {}]
  %s8 = inlined_call_operand.vmem [shape: s32[4,1], index: 8, kind: input, shape index: {}]
  %s9 = inlined_call_operand.vmem [shape: s32[12,1], index: 9, kind: input, shape index: {}]
  %s10 = inlined_call_operand.hbm [shape: f32[1,1], index: 10, kind: output, shape index: {0}]
  %s11 = inlined_call_operand.hbm [shape: f32[1,1], index: 11, kind: output, shape index: {1}]
  %s12 = inlined_call_operand.hbm [shape: f32[1,1], index: 12, kind: output, shape index: {2}]
  %s13 = inlined_call_operand.hbm [shape: f32[1,1], index: 13, kind: output, shape index: {3}]
  %14 = xla_tuple %s10, %s11, %s12, %s13
  %s15 = sld [smem:[#allocation0]]
  $region74: #{sskd_component_losses.1} parent=0
    _
  %s17 = ssub.s32 1, %s15
  %s18 = scalar_select 0, %s17, %s15
  $region1: #{sskd_component_losses.1} parent=0
    #allocation2 [shape = 'u8[512]{0}', space=vmem, size = 0x400, scoped, tag = 'output window, operand 0, single buffered']
    #allocation3 [shape = 's32[1]{0}', space=sflag, size = 0x4, scoped, tag = 'scoped memory for sskd_component_losses.1']
    #allocation4 [shape = 'u8[512]{0}', space=vmem, size = 0x400, scoped, tag = 'output window, operand 1, single buffered']
    #allocation5 [shape = 's32[1]{0}', space=sflag, size = 0x4, scoped, tag = 'scoped memory for sskd_component_losses.1']
    #allocation6 [shape = 'u8[512]{0}', space=vmem, size = 0x400, scoped, tag = 'output window, operand 2, single buffered']
    #allocation7 [shape = 'u8[512]{0}', space=vmem, size = 0x400, scoped, tag = 'output window, operand 3, single buffered']
    #allocation8 [shape = 's32[1]{0}', space=sflag, size = 0x4, scoped, tag = 'scoped memory for sskd_component_losses.1']
    %19 = vsyncpa [#allocation3], 0
    %20 = vsyncpa [#allocation5], 0
    %21 = vsyncpa [#allocation8], 0
    // Predicated region
    $region2: #{sskd_component_losses.1} parent=1 // pred_check
      _
    $region3: #{sskd_component_losses.1} parent=1 // pred_check_branch
      %23 = sbr.rel (0) target = $region5
    $region4: #{sskd_component_losses.1} parent=1 // pred_region
      _
    $region5: #{sskd_component_losses.1} parent=1 // pred_fallthru
      _
    // Predicated region
    $region6: #{sskd_component_losses.1} parent=1 // pred_check
      _
    $region7: #{sskd_component_losses.1} parent=1 // pred_check_branch
      %25 = sbr.rel (0) target = $region9
    $region8: #{sskd_component_losses.1} parent=1 // pred_region
      _
    $region9: #{sskd_component_losses.1} parent=1 // pred_fallthru
      _
    // Predicated region
    $region10: #{sskd_component_losses.1} parent=1 // pred_check
      _
    $region11: #{sskd_component_losses.1} parent=1 // pred_check_branch
      %27 = sbr.rel (0) target = $region13
    $region12: #{sskd_component_losses.1} parent=1 // pred_region
      _
    $region13: #{sskd_component_losses.1} parent=1 // pred_fallthru
      _
    // Predicated region
    $region14: #{sskd_component_losses.1} parent=1 // pred_check
      _
    $region15: #{sskd_component_losses.1} parent=1 // pred_check_branch
      %29 = sbr.rel (0) target = $region17
    $region16: #{sskd_component_losses.1} parent=1 // pred_region
      _
    $region17: #{sskd_component_losses.1} parent=1 // pred_fallthru
      _
    // Predicated region
    $region18: #{sskd_component_losses.1} parent=1 // pred_check
      _
    $region19: #{sskd_component_losses.1} parent=1 // pred_check_branch
      %31 = sbr.rel (0) target = $region21
    $region20: #{sskd_component_losses.1} parent=1 // pred_region
      _
    $region21: #{sskd_component_losses.1} parent=1 // pred_fallthru
      _
    // Predicated region
    $region22: #{sskd_component_losses.1} parent=1 // pred_check
      _
    $region23: #{sskd_component_losses.1} parent=1 // pred_check_branch
      %33 = sbr.rel (0) target = $region25
    $region24: #{sskd_component_losses.1} parent=1 // pred_region
      _
    $region25: #{sskd_component_losses.1} parent=1 // pred_fallthru
      _
    // Predicated region
    $region26: #{sskd_component_losses.1} parent=1 // pred_check
      _
    $region27: #{sskd_component_losses.1} parent=1 // pred_check_branch
      %35 = sbr.rel (0) target = $region29
    $region28: #{sskd_component_losses.1} parent=1 // pred_region
      _
    $region29: #{sskd_component_losses.1} parent=1 // pred_fallthru
      _
    // Predicated region
    $region30: #{sskd_component_losses.1} parent=1 // pred_check
      _
    $region31: #{sskd_component_losses.1} parent=1 // pred_check_branch
      %37 = sbr.rel (0) target = $region33
    $region32: #{sskd_component_losses.1} parent=1 // pred_region
      _
    $region33: #{sskd_component_losses.1} parent=1 // pred_fallthru
      _
    // Predicated region
    $region34: #{sskd_component_losses.1} parent=1 // pred_check
      _
    $region35: #{sskd_component_losses.1} parent=1 // pred_check_branch
      %39 = sbr.rel (0) target = $region37
    $region36: #{sskd_component_losses.1} parent=1 // pred_region
      _
    $region37: #{sskd_component_losses.1} parent=1 // pred_fallthru
      _
    // Predicated region
    $region38: #{sskd_component_losses.1} parent=1 // pred_check
      _
    $region39: #{sskd_component_losses.1} parent=1 // pred_check_branch
      %41 = sbr.rel (0) target = $region41
    $region40: #{sskd_component_losses.1} parent=1 // pred_region
      _
    $region41: #{sskd_component_losses.1} parent=1 // pred_fallthru
      _
    %v42 = vld [vmem:[%s0] sm:$0xf]
    %v43 = vld [vmem:[%s1] sm:$0xf]
    %v44 = vld [vmem:[%s2] sm:$0xff]
    %v45 = vld [vmem:[%s2 + $0x8] sm:$0xf]
    %v46 = vld [vmem:[%s3] sm:$0xff]
    %v47 = vld [vmem:[%s3 + $0x8] sm:$0xf]
    %v48 = vld [vmem:[%s8] sm:$0xf]
    %v49 = vlaneseq
    %v50 = vand.u32 %v49, 127
    %vm51 = vcmask 257024
    %v52 = vsel %vm51, %v42, -inf
    %53 = vmax.xlane.f32.xlu0 %v52
    %v54 = vpop.xlane.xlu0 %53
    %v55 = vsub.f32 %v42, %v54
    %v56 = vmul.f32 %v55, 1.442695
    %v57 = vpow.pop %v56
    %v58 = vsel %vm51, %v57, 0.0
    %59 = vadd.xlane.f32.xlu0 %v58
    %v60 = vpop.xlane.xlu0 %59
    %v61 = vlog2.pop %v60
    %v62 = vmul.f32 %v61, 0.6931472
    %v63 = vadd.f32 %v54, %v62
    %64 = vset.pattern.permute.xlu0 0
    %65 = vperm.xlu0 %64, %v48
    %v66 = vpop.permute.xlu0 %65
    %vm67 = vcmp.eq.s32.totalorder %v50, %v66
    %v68 = vsel %vm67, %v42, 0.0
    %v69 = vsel %vm51, %v68, 0.0
    %70 = vadd.xlane.f32.xlu0 %v69
    %v71 = vpop.xlane.xlu0 %70
    %v72 = vsub.f32 %v63, %v71
    %vm73 = vcmask 3072
    %v74 = vsel %vm73, %v72, 0.0
    %75 = vadd.xlane.f32.xlu0 %v74
    %v76 = vpop.xlane.xlu0 %75
    %v77 = vrot.slane %v76, 4
    %v78 = vadd.f32 %v76, %v77
    %v79 = vrot.slane %v78, 2
    %v80 = vadd.f32 %v78, %v79
    %v81 = vrot.slane %v80, 1
    %v82 = vadd.f32 %v80, %v81
    %s83 = vtos %v82
    %v84 = vrcp.pop 4.0
    %s85 = vtos %v84
    %s86 = smul.f32 %s83, %s85
    %v87 = vmul.f32 %v42, 0.25
    %v88 = vmul.f32 %v43, 0.25
    %v89 = vsel %vm51, %v87, -inf
    %90 = vmax.xlane.f32.xlu0 %v89
    %v91 = vpop.xlane.xlu0 %90
    %v92 = vsub.f32 %v87, %v91
    %v93 = vsel %vm51, %v88, -inf
    %94 = vmax.xlane.f32.xlu0 %v93
    %v95 = vpop.xlane.xlu0 %94
    %v96 = vsub.f32 %v88, %v95
    %v97 = vmul.f32 %v92, 1.442695
    %v98 = vpow.pop %v97
    %v99 = vmul.f32 %v96, 1.442695
    %v100 = vpow.pop %v99
    %v101 = vsel %vm51, %v98, 0.0
    %102 = vadd.xlane.f32.xlu0 %v101
    %v103 = vpop.xlane.xlu0 %102
    %v104 = vsel %vm51, %v100, 0.0
    %105 = vadd.xlane.f32.xlu0 %v104
    %v106 = vpop.xlane.xlu0 %105
    %v107 = vsub.f32 %v96, %v92
    %v108 = vmul.f32 %v100, %v107
    %v109 = vsel %vm51, %v108, 0.0
    %110 = vadd.xlane.f32.xlu0 %v109
    %v111 = vpop.xlane.xlu0 %110
    %v112 = vrcp.pop %v106
    %v113 = vmul.f32 %v111, %v112
    %v114 = vlog2.pop %v103
    %v115 = vmul.f32 %v114, 0.6931472
    %v116 = vadd.f32 %v113, %v115
    %v117 = vlog2.pop %v106
    %v118 = vmul.f32 %v117, 0.6931472
    %v119 = vsub.f32 %v116, %v118
    %v120 = vsel %vm73, %v119, 0.0
    %121 = vadd.xlane.f32.xlu0 %v120
    %v122 = vpop.xlane.xlu0 %121
    %v123 = vrot.slane %v122, 4
    %v124 = vadd.f32 %v122, %v123
    %v125 = vrot.slane %v124, 2
    %v126 = vadd.f32 %v124, %v125
    %v127 = vrot.slane %v126, 1
    %v128 = vadd.f32 %v126, %v127
    %s129 = vtos %v128
    %s130 = smul.f32 %s129, 16.0
    %v131 = vrcp.pop 4.0
    %s132 = vtos %v131
    %s133 = smul.f32 %s130, %s132
    %v134 = vld [vmem:[%s9] sm:$0xff]
    %v135 = vld [vmem:[%s9 + $0x8] sm:$0xf]
    %136 = vset.pattern.permute.xlu0 0
    %137 = vperm.xlu0 %136, %v134
    %v138 = vpop.permute.xlu0 %137
    %139 = vset.pattern.permute.xlu0 0
    %140 = vperm.xlu0 %139, %v135
    %v141 = vpop.permute.xlu0 %140
    %vm142 = vcmp.eq.s32.totalorder %v50, %v138
    %vm143 = vcmp.eq.s32.totalorder %v50, %v141
    %v144 = vsel %vm142, %v46, 0.0
    %v145 = vsel %vm143, %v47, 0.0
    %vm146 = vcmask 261120
    %v147 = vsel %vm146, %v144, 0.0
    %148 = vadd.xlane.f32.xlu0 %v147
    %v149 = vpop.xlane.xlu0 %148
    %v150 = vsel %vm51, %v145, 0.0
    %151 = vadd.xlane.f32.xlu0 %v150
    %v152 = vpop.xlane.xlu0 %151
    %vm153 = vcmp.gt.f32.partialorder %v46, %v149
    %vm154 = vcmp.gt.f32.partialorder %v47, %v152
    %v155 = vsel %vm153, 1, 0
    %v156 = vsel %vm154, 1, 0
    %v157 = vcvt.s32.f32 %v155
    %v158 = vcvt.s32.f32 %v156
    %v159 = vsel %vm146, %v157, 0.0
    %160 = vadd.xlane.f32.xlu0 %v159
    %v161 = vpop.xlane.xlu0 %160
    %v162 = vsel %vm51, %v158, 0.0
    %163 = vadd.xlane.f32.xlu0 %v162
    %v164 = vpop.xlane.xlu0 %163
    %v166 = vsel %vm146, 1.0, 0
    %v169 = vsel %vm146, %v157, 0
    %v172 = vsel %vm146, %v158, 0
    %174 = vmatprep.subr.mxu0 0.0
    %175 = vmatpush1.xpose.msra.mxu0 %v169
    %176 = vmatprep.subr.mxu0 0.0
    %177 = vmatpush1.xpose.msra.mxu0 %v172
    %178 = vmatprep.subr.mxu0 0.0
    %179 = vmatpush1.xpose.msra.mxu0 0.0
    %180 = vmatprep.subr.mxu0 0.0
    %181 = vmatpush1.xpose.msra.mxu0 0.0
    %182 = vmatprep.subr.mxu0 0.0
    %183 = vmatpush1.xpose.msra.mxu0 0.0
    %184 = vmatprep.subr.mxu0 0.0
    %185 = vmatpush1.xpose.msra.mxu0 0.0
    %186 = vmatprep.subr.mxu0 0.0
    %187 = vmatpush1.xpose.msra.mxu0 0.0
    %188 = vmatprep.subr.mxu0 0.0
    %189 = vmatpush1.xpose.msra.mxu0 0.0
    %190 = vmatprep.subr.mxu0 0.0
    %191 = vmatpush1.xpose.msra.mxu0 0.0
    %192 = vmatprep.subr.mxu0 0.0
    %193 = vmatpush1.xpose.msra.mxu0 0.0
    %194 = vmatprep.subr.mxu0 0.0
    %195 = vmatpush1.xpose.msra.mxu0 0.0
    %196 = vmatprep.subr.mxu0 0.0
    %197 = vmatpush1.xpose.msra.mxu0 0.0
    %198 = vmatprep.subr.mxu0 0.0
    %199 = vmatpush1.xpose.msra.mxu0 0.0
    %200 = vmatprep.subr.mxu0 0.0
    %201 = vmatpush1.xpose.msra.mxu0 0.0
    %202 = vmatprep.subr.mxu0 0.0
    %203 = vmatpush1.xpose.msra.mxu0 0.0
    %204 = vmatprep.subr.mxu0 0.0
    %205 = vmatpush1.xpose.msra.mxu0 0.0
    %206 = vmatprep.subr.mxu0 0.0
    %207 = vmatpush1.xpose.msra.mxu0 0.0
    %208 = vmatprep.subr.mxu0 0.0
    %209 = vmatpush1.xpose.msra.mxu0 0.0
    %210 = vmatprep.subr.mxu0 0.0
    %211 = vmatpush1.xpose.msra.mxu0 0.0
    %212 = vmatprep.subr.mxu0 0.0
    %213 = vmatpush1.xpose.msra.mxu0 0.0
    %214 = vmatprep.subr.mxu0 0.0
    %215 = vmatpush1.xpose.msra.mxu0 0.0
    %216 = vmatprep.subr.mxu0 0.0
    %217 = vmatpush1.xpose.msra.mxu0 0.0
    %218 = vmatprep.subr.mxu0 0.0
    %219 = vmatpush1.xpose.msra.mxu0 0.0
    %220 = vmatprep.subr.mxu0 0.0
    %221 = vmatpush1.xpose.msra.mxu0 0.0
    %222 = vmatprep.subr.mxu0 0.0
    %223 = vmatpush1.xpose.msra.mxu0 0.0
    %224 = vmatprep.subr.mxu0 0.0
    %225 = vmatpush1.xpose.msra.mxu0 0.0
    %226 = vmatprep.subr.mxu0 0.0
    %227 = vmatpush1.xpose.msra.mxu0 0.0
    %228 = vmatprep.subr.mxu0 0.0
    %229 = vmatpush1.xpose.msra.mxu0 0.0
    %230 = vmatprep.subr.mxu0 0.0
    %231 = vmatpush1.xpose.msra.mxu0 0.0
    %232 = vmatprep.subr.mxu0 0.0
    %233 = vmatpush1.xpose.msra.mxu0 0.0
    %234 = vmatprep.subr.mxu0 0.0
    %235 = vmatpush1.xpose.msra.mxu0 0.0
    %236 = vmatprep.subr.mxu0 0.0
    %237 = vmatpush1.xpose.msra.mxu0 0.0
    %238 = vmatprep.mubr.f32.mxu0 0.0
    %239 = vmatmul.mubr.f32.gmra.mrb[0].mxu0 %v166
    %v240 = vpop.f32.mrb[0].mxu0
    %v241 = vadd.f32 0.0, %v240
    %v242 = vpop.f32.mrb[0].mxu0
    %243 = vdwg.mxu0
    %vm244 = vcmp.eq.f32.partialorder %v161, 0.0
    %vm245 = vcmp.eq.f32.partialorder %v164, 0.0
    %v246 = vsel %vm244, 1, 0
    %v247 = vsel %vm245, 1, 0
    %v248 = vcvt.s32.f32 %v246
    %v249 = vcvt.s32.f32 %v247
    %vm250 = vcmask 7168
    %v251 = vsel %vm250, %v248, 0.0
    %v252 = vsel %vm73, %v249, 0.0
    %v253 = vadd.f32 %v251, %v252
    %254 = vadd.xlane.f32.xlu0 %v253
    %v255 = vpop.xlane.xlu0 %254
    %v256 = vrot.slane %v255, 4
    %v257 = vadd.f32 %v255, %v256
    %v258 = vrot.slane %v257, 2
    %v259 = vadd.f32 %v257, %v258
    %v260 = vrot.slane %v259, 1
    %v261 = vadd.f32 %v259, %v260
    %s262 = vtos %v261
    %s263 = ssub.f32 12.0, %s262
    %s264 = sfloor.f32 %s263
    %s265 = sadd.f32 %s262, %s264
    %s266 = smax.f32 %s265, 1.0
    %v267 = vlaneseq
    %v268 = vshrl.u32 %v267, 7
    %v269 = vadd.s32 %v268, 8
    %v270 = vlaneseq
    %v271 = vshrl.u32 %v270, 7
    %v272 = vsub.s32 0, %v271
    %v273 = vrot.slane %v241, %v272
    %vm274 = vcmp.lt.f32.partialorder %v273, %v161
    %vm275 = vcmp.lt.f32.partialorder %v273, %v164
    %vm276 = vcmp.eq.f32.partialorder %v273, %v161
    %vm277 = vcmp.eq.f32.partialorder %v273, %v164
    %vm278 = vcmp.lt.s32.totalorder %v50, %v268
    %vm279 = vcmp.lt.s32.totalorder %v50, %v269
    %vm280 = vmand %vm276, %vm278
    %vm281 = vmand %vm277, %vm279
    %vm282 = vmor %vm274, %vm280
    %vm283 = vmor %vm275, %vm281
    %v284 = vsel %vm282, 1, 0
    %v285 = vsel %vm283, 1, 0
    %v286 = vcvt.s32.f32 %v284
    %v287 = vcvt.s32.f32 %v285
    %vm288 = vcmask 97280
    %v289 = vsel %vm288, %v286, 0.0
    %290 = vadd.xlane.f32.xlu0 %v289
    %v291 = vpop.xlane.xlu0 %290
    %vm292 = vcmask 93184
    %v293 = vsel %vm292, %v287, 0.0
    %294 = vadd.xlane.f32.xlu0 %v293
    %v295 = vpop.xlane.xlu0 %294
    %v296 = vstv %s266
    %vm297 = vcmp.lt.f32.partialorder %v291, %v296
    %vm298 = vcmp.lt.f32.partialorder %v295, %v296
    %v299 = vsel %vm297, 1, 0
    %v300 = vsel %vm298, 1, 0
    %v301 = vcvt.s32.f32 %v299
    %v302 = vcvt.s32.f32 %v300
    %v303 = vmul.f32 %v44, 0.25
    %v304 = vmul.f32 %v45, 0.25
    %v305 = vmul.f32 %v46, 0.25
    %v306 = vmul.f32 %v47, 0.25
    %v307 = vsel %vm146, %v303, -inf
    %308 = vmax.xlane.f32.xlu0 %v307
    %v309 = vpop.xlane.xlu0 %308
    %v310 = vsel %vm51, %v304, -inf
    %311 = vmax.xlane.f32.xlu0 %v310
    %v312 = vpop.xlane.xlu0 %311
    %v313 = vsub.f32 %v303, %v309
    %v314 = vsub.f32 %v304, %v312
    %v315 = vsel %vm146, %v305, -inf
    %316 = vmax.xlane.f32.xlu0 %v315
    %v317 = vpop.xlane.xlu0 %316
    %v318 = vsel %vm51, %v306, -inf
    %319 = vmax.xlane.f32.xlu0 %v318
    %v320 = vpop.xlane.xlu0 %319
    %v321 = vsub.f32 %v305, %v317
    %v322 = vsub.f32 %v306, %v320
    %v323 = vmul.f32 %v313, 1.442695
    %v324 = vpow.pop %v323
    %v325 = vmul.f32 %v314, 1.442695
    %v326 = vpow.pop %v325
    %v327 = vmul.f32 %v321, 1.442695
    %v328 = vpow.pop %v327
    %v329 = vmul.f32 %v322, 1.442695
    %v330 = vpow.pop %v329
    %v331 = vsel %vm146, %v324, 0.0
    %332 = vadd.xlane.f32.xlu0 %v331
    %v333 = vpop.xlane.xlu0 %332
    %v334 = vsel %vm51, %v326, 0.0
    %335 = vadd.xlane.f32.xlu0 %v334
    %v336 = vpop.xlane.xlu0 %335
    %v337 = vsel %vm146, %v328, 0.0
    %338 = vadd.xlane.f32.xlu0 %v337
    %v339 = vpop.xlane.xlu0 %338
    %v340 = vsel %vm51, %v330, 0.0
    %341 = vadd.xlane.f32.xlu0 %v340
    %v342 = vpop.xlane.xlu0 %341
    %v343 = vsub.f32 %v321, %v313
    %v344 = vsub.f32 %v322, %v314
    %v345 = vmul.f32 %v328, %v343
    %v346 = vmul.f32 %v330, %v344
    %v347 = vsel %vm146, %v345, 0.0
    %348 = vadd.xlane.f32.xlu0 %v347
    %v349 = vpop.xlane.xlu0 %348
    %v350 = vsel %vm51, %v346, 0.0
    %351 = vadd.xlane.f32.xlu0 %v350
    %v352 = vpop.xlane.xlu0 %351
    %v353 = vrcp.pop %v339
    %v354 = vmul.f32 %v349, %v353
    %v355 = vrcp.pop %v342
    %v356 = vmul.f32 %v352, %v355
    %v357 = vlog2.pop %v333
    %v358 = vmul.f32 %v357, 0.6931472
    %v359 = vlog2.pop %v336
    %v360 = vmul.f32 %v359, 0.6931472
    %v361 = vadd.f32 %v354, %v358
    %v362 = vadd.f32 %v356, %v360
    %v363 = vlog2.pop %v339
    %v364 = vmul.f32 %v363, 0.6931472
    %v365 = vlog2.pop %v342
    %v366 = vmul.f32 %v365, 0.6931472
    %v367 = vsub.f32 %v361, %v364
    %v368 = vsub.f32 %v362, %v366
    %v369 = vmul.f32 %v301, %v367
    %v370 = vmul.f32 %v302, %v368
    %v371 = vsel %vm250, %v369, 0.0
    %v372 = vsel %vm73, %v370, 0.0
    %v373 = vadd.f32 %v371, %v372
    %374 = vadd.xlane.f32.xlu0 %v373
    %v375 = vpop.xlane.xlu0 %374
    %v376 = vrot.slane %v375, 4
    %v377 = vadd.f32 %v375, %v376
    %v378 = vrot.slane %v377, 2
    %v379 = vadd.f32 %v377, %v378
    %v380 = vrot.slane %v379, 1
    %v381 = vadd.f32 %v379, %v380
    %s382 = vtos %v381
    %s383 = smul.f32 %s382, 16.0
    %v384 = vstv %s266
    %v385 = vrcp.pop %v384
    %s386 = vtos %v385
    %s387 = smul.f32 %s383, %s386
    %v388 = vld [vmem:[%s5] sm:$0xff]
    %v389 = vld [vmem:[%s5 + $0x8] sm:$0xf]
    %v390 = vld [vmem:[%s4] sm:$0xf]
    %v391 = vmul.f32 %v388, %v388
    %v392 = vmul.f32 %v389, %v389
    %vm393 = vcmask 523264
    %v394 = vsel %vm393, %v391, 0.0
    %395 = vadd.xlane.f32.xlu0 %v394
    %v396 = vpop.xlane.xlu0 %395
    %vm397 = vcmask 519168
    %v398 = vsel %vm397, %v392, 0.0
    %399 = vadd.xlane.f32.xlu0 %v398
    %v400 = vpop.xlane.xlu0 %399
    %v401 = vmax.f32 %v396, 1e-16
    %v402 = vmax.f32 %v400, 1e-16
    %v403 = vrsqrt.pop %v401
    %v404 = vrsqrt.pop %v402
    %v405 = vmul.f32 %v388, %v403
    %v406 = vmul.f32 %v389, %v404
    %v407 = vmul.f32 %v390, %v390
    %v408 = vsel %vm397, %v407, 0.0
    %409 = vadd.xlane.f32.xlu0 %v408
    %v410 = vpop.xlane.xlu0 %409
    %v411 = vmax.f32 %v410, 1e-16
    %v412 = vrsqrt.pop %v411
    %v413 = vmul.f32 %v390, %v412
    %v415 = vsel %vm393, %v405, 0
    %v418 = vsel %vm393, %v406, 0
    %v421 = vsel %vm393, %v413, 0
    %423 = vmatprep.subr.mxu0 0.0
    %424 = vmatpush1.xpose.msra.mxu0 %v421
    %425 = vmatprep.subr.mxu0 0.0
    %426 = vmatpush1.xpose.msra.mxu0 0.0
    %427 = vmatprep.subr.mxu0 0.0
    %428 = vmatpush1.xpose.msra.mxu0 0.0
    %429 = vmatprep.subr.mxu0 0.0
    %430 = vmatpush1.xpose.msra.mxu0 0.0
    %431 = vmatprep.subr.mxu0 0.0
    %432 = vmatpush1.xpose.msra.mxu0 0.0
    %433 = vmatprep.subr.mxu0 0.0
    %434 = vmatpush1.xpose.msra.mxu0 0.0
    %435 = vmatprep.subr.mxu0 0.0
    %436 = vmatpush1.xpose.msra.mxu0 0.0
    %437 = vmatprep.subr.mxu0 0.0
    %438 = vmatpush1.xpose.msra.mxu0 0.0
    %439 = vmatprep.subr.mxu0 0.0
    %440 = vmatpush1.xpose.msra.mxu0 0.0
    %441 = vmatprep.subr.mxu0 0.0
    %442 = vmatpush1.xpose.msra.mxu0 0.0
    %443 = vmatprep.subr.mxu0 0.0
    %444 = vmatpush1.xpose.msra.mxu0 0.0
    %445 = vmatprep.subr.mxu0 0.0
    %446 = vmatpush1.xpose.msra.mxu0 0.0
    %447 = vmatprep.subr.mxu0 0.0
    %448 = vmatpush1.xpose.msra.mxu0 0.0
    %449 = vmatprep.subr.mxu0 0.0
    %450 = vmatpush1.xpose.msra.mxu0 0.0
    %451 = vmatprep.subr.mxu0 0.0
    %452 = vmatpush1.xpose.msra.mxu0 0.0
    %453 = vmatprep.subr.mxu0 0.0
    %454 = vmatpush1.xpose.msra.mxu0 0.0
    %455 = vmatprep.subr.mxu0 0.0
    %456 = vmatpush1.xpose.msra.mxu0 0.0
    %457 = vmatprep.subr.mxu0 0.0
    %458 = vmatpush1.xpose.msra.mxu0 0.0
    %459 = vmatprep.subr.mxu0 0.0
    %460 = vmatpush1.xpose.msra.mxu0 0.0
    %461 = vmatprep.subr.mxu0 0.0
    %462 = vmatpush1.xpose.msra.mxu0 0.0
    %463 = vmatprep.subr.mxu0 0.0
    %464 = vmatpush1.xpose.msra.mxu0 0.0
    %465 = vmatprep.subr.mxu0 0.0
    %466 = vmatpush1.xpose.msra.mxu0 0.0
    %467 = vmatprep.subr.mxu0 0.0
    %468 = vmatpush1.xpose.msra.mxu0 0.0
    %469 = vmatprep.subr.mxu0 0.0
    %470 = vmatpush1.xpose.msra.mxu0 0.0
    %471 = vmatprep.subr.mxu0 0.0
    %472 = vmatpush1.xpose.msra.mxu0 0.0
    %473 = vmatprep.subr.mxu0 0.0
    %474 = vmatpush1.xpose.msra.mxu0 0.0
    %475 = vmatprep.subr.mxu0 0.0
    %476 = vmatpush1.xpose.msra.mxu0 0.0
    %477 = vmatprep.subr.mxu0 0.0
    %478 = vmatpush1.xpose.msra.mxu0 0.0
    %479 = vmatprep.subr.mxu0 0.0
    %480 = vmatpush1.xpose.msra.mxu0 0.0
    %481 = vmatprep.subr.mxu0 0.0
    %482 = vmatpush1.xpose.msra.mxu0 0.0
    %483 = vmatprep.subr.mxu0 0.0
    %484 = vmatpush1.xpose.msra.mxu0 0.0
    %485 = vmatprep.subr.mxu0 0.0
    %486 = vmatpush1.xpose.msra.mxu0 0.0
    %487 = vmatprep.mubr.f32.mxu0 0.0
    %488 = vmatmul.mubr.f32.gmra.mrb[0].mxu0 %v415
    %v489 = vpop.f32.mrb[0].mxu0
    %v490 = vadd.f32 0.0, %v489
    %v491 = vpop.f32.mrb[0].mxu0
    %492 = vmatprep.mubr.f32.mxu0 0.0
    %493 = vmatmul.mubr.f32.gmra.mrb[0].mxu0 %v418
    %v494 = vpop.f32.mrb[0].mxu0
    %v495 = vadd.f32 0.0, %v494
    %v496 = vpop.f32.mrb[0].mxu0
    %497 = vdwg.mxu0
    %v498 = vld [vmem:[%s7] sm:$0xff]
    %v499 = vld [vmem:[%s7 + $0x8] sm:$0xf]
    %v500 = vld [vmem:[%s6] sm:$0xf]
    %v501 = vmul.f32 %v498, %v498
    %v502 = vmul.f32 %v499, %v499
    %v503 = vsel %vm393, %v501, 0.0
    %504 = vadd.xlane.f32.xlu0 %v503
    %v505 = vpop.xlane.xlu0 %504
    %v506 = vsel %vm397, %v502, 0.0
    %507 = vadd.xlane.f32.xlu0 %v506
    %v508 = vpop.xlane.xlu0 %507
    %v509 = vmax.f32 %v505, 1e-16
    %v510 = vmax.f32 %v508, 1e-16
    %v511 = vrsqrt.pop %v509
    %v512 = vrsqrt.pop %v510
    %v513 = vmul.f32 %v498, %v511
    %v514 = vmul.f32 %v499, %v512
    %v515 = vmul.f32 %v500, %v500
    %v516 = vsel %vm397, %v515, 0.0
    %517 = vadd.xlane.f32.xlu0 %v516
    %v518 = vpop.xlane.xlu0 %517
    %v519 = vmax.f32 %v518, 1e-16
    %v520 = vrsqrt.pop %v519
    %v521 = vmul.f32 %v500, %v520
    %v523 = vsel %vm393, %v513, 0
    %v526 = vsel %vm393, %v514, 0
    %v529 = vsel %vm393, %v521, 0
    %531 = vmatprep.subr.mxu0 0.0
    %532 = vmatpush1.xpose.msra.mxu0 %v529
    %533 = vmatprep.subr.mxu0 0.0
    %534 = vmatpush1.xpose.msra.mxu0 0.0
    %535 = vmatprep.subr.mxu0 0.0
    %536 = vmatpush1.xpose.msra.mxu0 0.0
    %537 = vmatprep.subr.mxu0 0.0
    %538 = vmatpush1.xpose.msra.mxu0 0.0
    %539 = vmatprep.subr.mxu0 0.0
    %540 = vmatpush1.xpose.msra.mxu0 0.0
    %541 = vmatprep.subr.mxu0 0.0
    %542 = vmatpush1.xpose.msra.mxu0 0.0
    %543 = vmatprep.subr.mxu0 0.0
    %544 = vmatpush1.xpose.msra.mxu0 0.0
    %545 = vmatprep.subr.mxu0 0.0
    %546 = vmatpush1.xpose.msra.mxu0 0.0
    %547 = vmatprep.subr.mxu0 0.0
    %548 = vmatpush1.xpose.msra.mxu0 0.0
    %549 = vmatprep.subr.mxu0 0.0
    %550 = vmatpush1.xpose.msra.mxu0 0.0
    %551 = vmatprep.subr.mxu0 0.0
    %552 = vmatpush1.xpose.msra.mxu0 0.0
    %553 = vmatprep.subr.mxu0 0.0
    %554 = vmatpush1.xpose.msra.mxu0 0.0
    %555 = vmatprep.subr.mxu0 0.0
    %556 = vmatpush1.xpose.msra.mxu0 0.0
    %557 = vmatprep.subr.mxu0 0.0
    %558 = vmatpush1.xpose.msra.mxu0 0.0
    %559 = vmatprep.subr.mxu0 0.0
    %560 = vmatpush1.xpose.msra.mxu0 0.0
    %561 = vmatprep.subr.mxu0 0.0
    %562 = vmatpush1.xpose.msra.mxu0 0.0
    %563 = vmatprep.subr.mxu0 0.0
    %564 = vmatpush1.xpose.msra.mxu0 0.0
    %565 = vmatprep.subr.mxu0 0.0
    %566 = vmatpush1.xpose.msra.mxu0 0.0
    %567 = vmatprep.subr.mxu0 0.0
    %568 = vmatpush1.xpose.msra.mxu0 0.0
    %569 = vmatprep.subr.mxu0 0.0
    %570 = vmatpush1.xpose.msra.mxu0 0.0
    %571 = vmatprep.subr.mxu0 0.0
    %572 = vmatpush1.xpose.msra.mxu0 0.0
    %573 = vmatprep.subr.mxu0 0.0
    %574 = vmatpush1.xpose.msra.mxu0 0.0
    %575 = vmatprep.subr.mxu0 0.0
    %576 = vmatpush1.xpose.msra.mxu0 0.0
    %577 = vmatprep.subr.mxu0 0.0
    %578 = vmatpush1.xpose.msra.mxu0 0.0
    %579 = vmatprep.subr.mxu0 0.0
    %580 = vmatpush1.xpose.msra.mxu0 0.0
    %581 = vmatprep.subr.mxu0 0.0
    %582 = vmatpush1.xpose.msra.mxu0 0.0
    %583 = vmatprep.subr.mxu0 0.0
    %584 = vmatpush1.xpose.msra.mxu0 0.0
    %585 = vmatprep.subr.mxu0 0.0
    %586 = vmatpush1.xpose.msra.mxu0 0.0
    %587 = vmatprep.subr.mxu0 0.0
    %588 = vmatpush1.xpose.msra.mxu0 0.0
    %589 = vmatprep.subr.mxu0 0.0
    %590 = vmatpush1.xpose.msra.mxu0 0.0
    %591 = vmatprep.subr.mxu0 0.0
    %592 = vmatpush1.xpose.msra.mxu0 0.0
    %593 = vmatprep.subr.mxu0 0.0
    %594 = vmatpush1.xpose.msra.mxu0 0.0
    %595 = vmatprep.mubr.f32.mxu0 0.0
    %596 = vmatmul.mubr.f32.gmra.mrb[0].mxu0 %v523
    %v597 = vpop.f32.mrb[0].mxu0
    %v598 = vadd.f32 0.0, %v597
    %v599 = vpop.f32.mrb[0].mxu0
    %600 = vmatprep.mubr.f32.mxu0 0.0
    %601 = vmatmul.mubr.f32.gmra.mrb[0].mxu0 %v526
    %v602 = vpop.f32.mrb[0].mxu0
    %v603 = vadd.f32 0.0, %v602
    %v604 = vpop.f32.mrb[0].mxu0
    %605 = vdwg.mxu0
    %v606 = vmul.u32 %v50, 3
    %vm607 = vcmp.ge.s32.totalorder %v268, %v606
    %vm608 = vcmp.ge.s32.totalorder %v269, %v606
    %v609 = vadd.s32 %v606, 3
    %vm610 = vcmp.lt.s32.totalorder %v268, %v609
    %vm611 = vcmp.lt.s32.totalorder %v269, %v609
    %vm612 = vmand %vm607, %vm610
    %vm613 = vmand %vm608, %vm611
    %v614 = vsel %vm612, %v598, 0.0
    %v615 = vsel %vm613, %v603, 0.0
    %vm616 = vcmask 31744
    %v617 = vsel %vm616, %v614, 0.0
    %618 = vadd.xlane.f32.xlu0 %v617
    %v619 = vpop.xlane.xlu0 %618
    %vm620 = vcmask 27648
    %v621 = vsel %vm620, %v615, 0.0
    %622 = vadd.xlane.f32.xlu0 %v621
    %v623 = vpop.xlane.xlu0 %622
    %vm624 = vcmp.gt.f32.partialorder %v598, %v619
    %vm625 = vcmp.gt.f32.partialorder %v603, %v623
    %v626 = vsel %vm624, 1, 0
    %v627 = vsel %vm625, 1, 0
    %v628 = vcvt.s32.f32 %v626
    %v629 = vcvt.s32.f32 %v627
    %v630 = vsel %vm616, %v628, 0.0
    %631 = vadd.xlane.f32.xlu0 %v630
    %v632 = vpop.xlane.xlu0 %631
    %v633 = vsel %vm620, %v629, 0.0
    %634 = vadd.xlane.f32.xlu0 %v633
    %v635 = vpop.xlane.xlu0 %634
    %v636 = vsel %vm616, 1.0, 0
    %v639 = vsel %vm616, %v628, 0
    %v642 = vsel %vm616, %v629, 0
    %644 = vmatprep.subr.mxu0 0.0
    %645 = vmatpush1.xpose.msra.mxu0 %v639
    %646 = vmatprep.subr.mxu0 0.0
    %647 = vmatpush1.xpose.msra.mxu0 %v642
    %648 = vmatprep.subr.mxu0 0.0
    %649 = vmatpush1.xpose.msra.mxu0 0.0
    %650 = vmatprep.subr.mxu0 0.0
    %651 = vmatpush1.xpose.msra.mxu0 0.0
    %652 = vmatprep.subr.mxu0 0.0
    %653 = vmatpush1.xpose.msra.mxu0 0.0
    %654 = vmatprep.subr.mxu0 0.0
    %655 = vmatpush1.xpose.msra.mxu0 0.0
    %656 = vmatprep.subr.mxu0 0.0
    %657 = vmatpush1.xpose.msra.mxu0 0.0
    %658 = vmatprep.subr.mxu0 0.0
    %659 = vmatpush1.xpose.msra.mxu0 0.0
    %660 = vmatprep.subr.mxu0 0.0
    %661 = vmatpush1.xpose.msra.mxu0 0.0
    %662 = vmatprep.subr.mxu0 0.0
    %663 = vmatpush1.xpose.msra.mxu0 0.0
    %664 = vmatprep.subr.mxu0 0.0
    %665 = vmatpush1.xpose.msra.mxu0 0.0
    %666 = vmatprep.subr.mxu0 0.0
    %667 = vmatpush1.xpose.msra.mxu0 0.0
    %668 = vmatprep.subr.mxu0 0.0
    %669 = vmatpush1.xpose.msra.mxu0 0.0
    %670 = vmatprep.subr.mxu0 0.0
    %671 = vmatpush1.xpose.msra.mxu0 0.0
    %672 = vmatprep.subr.mxu0 0.0
    %673 = vmatpush1.xpose.msra.mxu0 0.0
    %674 = vmatprep.subr.mxu0 0.0
    %675 = vmatpush1.xpose.msra.mxu0 0.0
    %676 = vmatprep.subr.mxu0 0.0
    %677 = vmatpush1.xpose.msra.mxu0 0.0
    %678 = vmatprep.subr.mxu0 0.0
    %679 = vmatpush1.xpose.msra.mxu0 0.0
    %680 = vmatprep.subr.mxu0 0.0
    %681 = vmatpush1.xpose.msra.mxu0 0.0
    %682 = vmatprep.subr.mxu0 0.0
    %683 = vmatpush1.xpose.msra.mxu0 0.0
    %684 = vmatprep.subr.mxu0 0.0
    %685 = vmatpush1.xpose.msra.mxu0 0.0
    %686 = vmatprep.subr.mxu0 0.0
    %687 = vmatpush1.xpose.msra.mxu0 0.0
    %688 = vmatprep.subr.mxu0 0.0
    %689 = vmatpush1.xpose.msra.mxu0 0.0
    %690 = vmatprep.subr.mxu0 0.0
    %691 = vmatpush1.xpose.msra.mxu0 0.0
    %692 = vmatprep.subr.mxu0 0.0
    %693 = vmatpush1.xpose.msra.mxu0 0.0
    %694 = vmatprep.subr.mxu0 0.0
    %695 = vmatpush1.xpose.msra.mxu0 0.0
    %696 = vmatprep.subr.mxu0 0.0
    %697 = vmatpush1.xpose.msra.mxu0 0.0
    %698 = vmatprep.subr.mxu0 0.0
    %699 = vmatpush1.xpose.msra.mxu0 0.0
    %700 = vmatprep.subr.mxu0 0.0
    %701 = vmatpush1.xpose.msra.mxu0 0.0
    %702 = vmatprep.subr.mxu0 0.0
    %703 = vmatpush1.xpose.msra.mxu0 0.0
    %704 = vmatprep.subr.mxu0 0.0
    %705 = vmatpush1.xpose.msra.mxu0 0.0
    %706 = vmatprep.subr.mxu0 0.0
    %707 = vmatpush1.xpose.msra.mxu0 0.0
    %708 = vmatprep.mubr.f32.mxu0 0.0
    %709 = vmatmul.mubr.f32.gmra.mrb[0].mxu0 %v636
    %v710 = vpop.f32.mrb[0].mxu0
    %v711 = vadd.f32 0.0, %v710
    %v712 = vpop.f32.mrb[0].mxu0
    %713 = vdwg.mxu0
    %vm714 = vcmp.eq.f32.partialorder %v632, 0.0
    %vm715 = vcmp.eq.f32.partialorder %v635, 0.0
    %v716 = vsel %vm714, 1, 0
    %v717 = vsel %vm715, 1, 0
    %v718 = vcvt.s32.f32 %v716
    %v719 = vcvt.s32.f32 %v717
    %v720 = vsel %vm250, %v718, 0.0
    %v721 = vsel %vm73, %v719, 0.0
    %v722 = vadd.f32 %v720, %v721
    %723 = vadd.xlane.f32.xlu0 %v722
    %v724 = vpop.xlane.xlu0 %723
    %v725 = vrot.slane %v724, 4
    %v726 = vadd.f32 %v724, %v725
    %v727 = vrot.slane %v726, 2
    %v728 = vadd.f32 %v726, %v727
    %v729 = vrot.slane %v728, 1
    %v730 = vadd.f32 %v728, %v729
    %s731 = vtos %v730
    %s732 = ssub.f32 12.0, %s731
    %s733 = smul.f32 %s732, 0.75
    %s734 = sfloor.f32 %s733
    %s735 = sadd.f32 %s731, %s734
    %s736 = smax.f32 %s735, 1.0
    %v737 = vlaneseq
    %v738 = vshrl.u32 %v737, 7
    %v739 = vsub.s32 0, %v738
    %v740 = vrot.slane %v711, %v739
    %vm741 = vcmp.lt.f32.partialorder %v740, %v632
    %vm742 = vcmp.lt.f32.partialorder %v740, %v635
    %vm743 = vcmp.eq.f32.partialorder %v740, %v632
    %vm744 = vcmp.eq.f32.partialorder %v740, %v635
    %vm745 = vmand %vm743, %vm278
    %vm746 = vmand %vm744, %vm279
    %vm747 = vmor %vm741, %vm745
    %vm748 = vmor %vm742, %vm746
    %v749 = vsel %vm747, 1, 0
    %v750 = vsel %vm748, 1, 0
    %v751 = vcvt.s32.f32 %v749
    %v752 = vcvt.s32.f32 %v750
    %v753 = vsel %vm288, %v751, 0.0
    %754 = vadd.xlane.f32.xlu0 %v753
    %v755 = vpop.xlane.xlu0 %754
    %v756 = vsel %vm292, %v752, 0.0
    %757 = vadd.xlane.f32.xlu0 %v756
    %v758 = vpop.xlane.xlu0 %757
    %v759 = vstv %s736
    %vm760 = vcmp.lt.f32.partialorder %v755, %v759
    %vm761 = vcmp.lt.f32.partialorder %v758, %v759
    %v762 = vsel %vm760, 1, 0
    %v763 = vsel %vm761, 1, 0
    %v764 = vcvt.s32.f32 %v762
    %v765 = vcvt.s32.f32 %v763
    %v766 = vmul.f32 %v490, 2.0
    %v767 = vmul.f32 %v495, 2.0
    %v768 = vmul.f32 %v598, 2.0
    %v769 = vmul.f32 %v603, 2.0
    %v770 = vsel %vm616, %v766, -inf
    %771 = vmax.xlane.f32.xlu0 %v770
    %v772 = vpop.xlane.xlu0 %771
    %v773 = vsel %vm620, %v767, -inf
    %774 = vmax.xlane.f32.xlu0 %v773
    %v775 = vpop.xlane.xlu0 %774
    %v776 = vsub.f32 %v766, %v772
    %v777 = vsub.f32 %v767, %v775
    %v778 = vsel %vm616, %v768, -inf
    %779 = vmax.xlane.f32.xlu0 %v778
    %v780 = vpop.xlane.xlu0 %779
    %v781 = vsel %vm620, %v769, -inf
    %782 = vmax.xlane.f32.xlu0 %v781
    %v783 = vpop.xlane.xlu0 %782
    %v784 = vsub.f32 %v768, %v780
    %v785 = vsub.f32 %v769, %v783
    %v786 = vmul.f32 %v776, 1.442695
    %v787 = vpow.pop %v786
    %v788 = vmul.f32 %v777, 1.442695
    %v789 = vpow.pop %v788
    %v790 = vmul.f32 %v784, 1.442695
    %v791 = vpow.pop %v790
    %v792 = vmul.f32 %v785, 1.442695
    %v793 = vpow.pop %v792
    %v794 = vsel %vm616, %v787, 0.0
    %795 = vadd.xlane.f32.xlu0 %v794
    %v796 = vpop.xlane.xlu0 %795
    %v797 = vsel %vm620, %v789, 0.0
    %798 = vadd.xlane.f32.xlu0 %v797
    %v799 = vpop.xlane.xlu0 %798
    %v800 = vsel %vm616, %v791, 0.0
    %801 = vadd.xlane.f32.xlu0 %v800
    %v802 = vpop.xlane.xlu0 %801
    %v803 = vsel %vm620, %v793, 0.0
    %804 = vadd.xlane.f32.xlu0 %v803
    %v805 = vpop.xlane.xlu0 %804
    %v806 = vsub.f32 %v784, %v776
    %v807 = vsub.f32 %v785, %v777
    %v808 = vmul.f32 %v791, %v806
    %v809 = vmul.f32 %v793, %v807
    %v810 = vsel %vm616, %v808, 0.0
    %811 = vadd.xlane.f32.xlu0 %v810
    %v812 = vpop.xlane.xlu0 %811
    %v813 = vsel %vm620, %v809, 0.0
    %814 = vadd.xlane.f32.xlu0 %v813
    %v815 = vpop.xlane.xlu0 %814
    %v816 = vrcp.pop %v802
    %v817 = vmul.f32 %v812, %v816
    %v818 = vrcp.pop %v805
    %v819 = vmul.f32 %v815, %v818
    %v820 = vlog2.pop %v796
    %v821 = vmul.f32 %v820, 0.6931472
    %v822 = vlog2.pop %v799
    %v823 = vmul.f32 %v822, 0.6931472
    %v824 = vadd.f32 %v817, %v821
    %v825 = vadd.f32 %v819, %v823
    %v826 = vlog2.pop %v802
    %v827 = vmul.f32 %v826, 0.6931472
    %v828 = vlog2.pop %v805
    %v829 = vmul.f32 %v828, 0.6931472
    %v830 = vsub.f32 %v824, %v827
    %v831 = vsub.f32 %v825, %v829
    %v832 = vmul.f32 %v764, %v830
    %v833 = vmul.f32 %v765, %v831
    %v834 = vsel %vm250, %v832, 0.0
    %v835 = vsel %vm73, %v833, 0.0
    %v836 = vadd.f32 %v834, %v835
    %837 = vadd.xlane.f32.xlu0 %v836
    %v838 = vpop.xlane.xlu0 %837
    %v839 = vrot.slane %v838, 4
    %v840 = vadd.f32 %v838, %v839
    %v841 = vrot.slane %v840, 2
    %v842 = vadd.f32 %v840, %v841
    %v843 = vrot.slane %v842, 1
    %v844 = vadd.f32 %v842, %v843
    %s845 = vtos %v844
    %s846 = smul.f32 %s845, 0.25
    %v847 = vstv %s736
    %v848 = vrcp.pop %v847
    %s849 = vtos %v848
    %s850 = smul.f32 %s846, %s849
    %v851 = vstv %s86
    %vm852 = vcmask 0
    %853 = vst.msk [vmem:[#allocation2] sm:$0x1] %vm852, %v851
    %v854 = vstv %s133
    %855 = vst.msk [vmem:[#allocation4] sm:$0x1] %vm852, %v854
    %v856 = vstv %s850
    %857 = vst.msk [vmem:[#allocation6] sm:$0x1] %vm852, %v856
    %v858 = vstv %s387
    %859 = vst.msk [vmem:[#allocation7] sm:$0x1] %vm852, %v858
    // Predicated region
    $region42: #{sskd_component_losses.1} parent=1 // pred_check
      _
    $region43: #{sskd_component_losses.1} parent=1 // pred_check_branch
      %861 = sbr.rel (0) target = $region45
    $region44: #{sskd_component_losses.1} parent=1 // pred_region
      %s863 = ssub.s32 16, 16
      %864 = vsyncadd [#allocation3], %s863
      %s866 = sshll.u32 [#allocation2], 4
      %s867 = int_to_ptr.vmem [resolvable:$true] %s866
      %869 = dma.vmem_to_hbm [thread:$0]  %s867, 16, %s10, [#allocation3]
    $region45: #{sskd_component_losses.1} parent=1 // pred_fallthru
      _
    // Predicated region
    $region46: #{sskd_component_losses.1} parent=1 // pred_check
      _
    $region47: #{sskd_component_losses.1} parent=1 // pred_check_branch
      %871 = sbr.rel (0) target = $region49
    $region48: #{sskd_component_losses.1} parent=1 // pred_region
      %s873 = ssub.s32 16, 16
      %874 = vsyncadd [#allocation5], %s873
      %s876 = sshll.u32 [#allocation4], 4
      %s877 = int_to_ptr.vmem [resolvable:$true] %s876
      %879 = dma.vmem_to_hbm [thread:$0]  %s877, 16, %s11, [#allocation5]
    $region49: #{sskd_component_losses.1} parent=1 // pred_fallthru
      _
    // Predicated region
    $region50: #{sskd_component_losses.1} parent=1 // pred_check
      _
    $region51: #{sskd_component_losses.1} parent=1 // pred_check_branch
      %881 = sbr.rel (0) target = $region53
    $region52: #{sskd_component_losses.1} parent=1 // pred_region
      %s883 = ssub.s32 16, 16
      %884 = vsyncadd [#allocation5], %s883
      %s886 = sshll.u32 [#allocation6], 4
      %s887 = int_to_ptr.vmem [resolvable:$true] %s886
      %889 = dma.vmem_to_hbm [thread:$0]  %s887, 16, %s12, [#allocation5]
    $region53: #{sskd_component_losses.1} parent=1 // pred_fallthru
      _
    // Predicated region
    $region54: #{sskd_component_losses.1} parent=1 // pred_check
      _
    $region55: #{sskd_component_losses.1} parent=1 // pred_check_branch
      %891 = sbr.rel (0) target = $region57
    $region56: #{sskd_component_losses.1} parent=1 // pred_region
      %s893 = ssub.s32 16, 16
      %894 = vsyncadd [#allocation8], %s893
      %s896 = sshll.u32 [#allocation7], 4
      %s897 = int_to_ptr.vmem [resolvable:$true] %s896
      %899 = dma.vmem_to_hbm [thread:$0]  %s897, 16, %s13, [#allocation8]
    $region57: #{sskd_component_losses.1} parent=1 // pred_fallthru
      _
    // Predicated region
    $region58: #{sskd_component_losses.1} parent=1 // pred_check
      _
    $region59: #{sskd_component_losses.1} parent=1 // pred_check_branch
      %901 = sbr.rel (0) target = $region61
    $region60: #{sskd_component_losses.1} parent=1 // pred_region
      %902 = dma.done [#allocation3], 16
    $region61: #{sskd_component_losses.1} parent=1 // pred_fallthru
      _
    // Predicated region
    $region62: #{sskd_component_losses.1} parent=1 // pred_check
      _
    $region63: #{sskd_component_losses.1} parent=1 // pred_check_branch
      %904 = sbr.rel (0) target = $region65
    $region64: #{sskd_component_losses.1} parent=1 // pred_region
      %905 = dma.done [#allocation5], 16
    $region65: #{sskd_component_losses.1} parent=1 // pred_fallthru
      _
    // Predicated region
    $region66: #{sskd_component_losses.1} parent=1 // pred_check
      _
    $region67: #{sskd_component_losses.1} parent=1 // pred_check_branch
      %907 = sbr.rel (0) target = $region69
    $region68: #{sskd_component_losses.1} parent=1 // pred_region
      %908 = dma.done [#allocation5], 16
    $region69: #{sskd_component_losses.1} parent=1 // pred_fallthru
      _
    // Predicated region
    $region70: #{sskd_component_losses.1} parent=1 // pred_check
      _
    $region71: #{sskd_component_losses.1} parent=1 // pred_check_branch
      %910 = sbr.rel (0) target = $region73
    $region72: #{sskd_component_losses.1} parent=1 // pred_region
      %911 = dma.done [#allocation8], 16
    $region73: #{sskd_component_losses.1} parent=1 // pred_fallthru
      _
    %912 = vsyncpa [#allocation3], 1
    %913 = vsyncpa [#allocation5], 1
    %914 = vsyncpa [#allocation8], 1

</llo_original>
